<compile_context>
chip_gen: v6e
topology: v6e:2x2x1
jax: 0.10.0
libtpu: 0.0.40
codegen_flags: <defaults>
</compile_context>

<pallas_src>
import functools

import jax
import jax.numpy as jnp
from jax import lax
from jax.experimental import pallas as pl
from jax.experimental.pallas import tpu as pltpu

EPS = 1e-6
_LANE = 128
_SUBLANE = 8


def _nmf2d_kernel(x_ref, bases_ref, out_ref, *, inv_t, steps):
    """One batch-block of MU-NMF in transposed (lane-dense) layout.

      x_ref     : (bblk, Dp, Np)  bf16      -- the only big operand; resident across all steps
      bases_ref : (bblk, R,  Dp)  f32       -- B^T
      out_ref   : (bblk, Dp, Np)  f32/bf16  -- B @ coef^T
      coef is carried transposed as coefT : (bblk, R, Np)
    """
    x = x_ref[...]                        # bf16 (bblk, Dp, Np)
    basesT = bases_ref[...]               # f32  (bblk, R, Dp)

    def mm(a, b, eq):
        return jnp.einsum(eq, a, b, preferred_element_type=jnp.float32)

    # X^T B (transposed): reused as the softmax logits AND as the numerator of the first
    # MU coef update (bases unchanged in between) -> saves one full MXU pass over x.
    numer_cT = mm(basesT.astype(jnp.bfloat16), x, "brd,bdn->brn")      # (bblk,R,Np)

    # initial coef: softmax(inv_t * X^T B) over R (axis=1 in transposed layout).
    # Exact reciprocal here (accuracy endpoint).
    logits = inv_t * numer_cT
    logits = logits - jnp.max(logits, axis=1, keepdims=True)
    e = jnp.exp(logits)
    coefT = e / jnp.sum(e, axis=1, keepdims=True)

    def mu_step(_, carry):
        coefT, basesT, numer_cT = carry
        # coef <- coef * (X^T B) / (coef B^T B + eps)
        btb = mm(basesT, basesT, "brd,bsd->brs")                        # (bblk,R,R)
        denom_cT = mm(btb, coefT, "brs,bsn->brn")                       # (bblk,R,Np)
        coefT = coefT * numer_cT * pl.reciprocal(denom_cT + EPS, approx=True)
        # bases <- bases * (X coef) / (bases coef^T coef + eps)
        numer_bT = mm(coefT.astype(jnp.bfloat16), x, "brn,bdn->brd")    # (bblk,R,Dp)
        ctc = mm(coefT, coefT, "brn,bsn->brs")                          # (bblk,R,R)
        denom_bT = mm(ctc, basesT, "brs,bsd->brd")                      # (bblk,R,Dp)
        basesT = basesT * numer_bT * pl.reciprocal(denom_bT + EPS, approx=True)
        # refresh X^T B with updated bases (next coef update / final compute_coef)
        numer_cT = mm(basesT.astype(jnp.bfloat16), x, "brd,bdn->brn")
        return coefT, basesT, numer_cT

    # local_step iterations (eval_steps): fori_loop bounds live ranges vs. 7x unrolled bodies.
    coefT, basesT, numer_cT = lax.fori_loop(0, steps, mu_step, (coefT, basesT, numer_cT))

    # compute_coef: one extra coef MU update; exact reciprocal (accuracy endpoint).
    btb = mm(basesT, basesT, "brd,bsd->brs")
    denom_cT = mm(btb, coefT, "brs,bsn->brn")
    coefT = coefT * numer_cT / (denom_cT + EPS)

    # reconstruction: out = B @ coef^T = (basesT)^T @ coefT as a single batched,
    # lane-dense slab store.  Only the tiny (R,Dp) slab is transposed.
    bases_bdr = jnp.swapaxes(basesT, 1, 2).astype(jnp.bfloat16)         # (bblk,Dp,R)
    out_ref[...] = mm(bases_bdr, coefT.astype(jnp.bfloat16),
                      "bdr,brn->bdn").astype(out_ref.dtype)


def _tpu_budget():
    """Returns (usable per-core VMEM bytes, TensorCores per jax device)."""
    vmem_cap = 64 << 20          # conservative default = v7x per-core VMEM
    cores = 0
    try:
        info = pltpu.get_tpu_info()
        vmem_cap = int(getattr(info, "vmem_capacity_bytes", vmem_cap) or vmem_cap)
        cores = int(getattr(info, "num_cores", 0) or getattr(info, "core_count", 0) or 0)
    except Exception:
        pass
    if cores < 1:
        cores = 1
        try:
            kind = jax.devices()[0].device_kind.lower()
            # dual-TensorCore (megacore-style) devices
            if any(tag in kind for tag in ("v4", "v5p", "7")):
                cores = 2
        except Exception:
            pass
    return int(vmem_cap * 0.8), max(cores, 1)


def _vmem_bytes(bblk, Dp, Np, R, out_itemsize):
    """Conservative VMEM footprint of one grid step (double-buffered pipeline)."""
    x_bufs = 2 * bblk * Dp * Np * 2                  # bf16 x input, double buffered
    b_bufs = 2 * bblk * R * Dp * 4                   # f32 basesT input, double buffered
    o_bufs = 2 * bblk * Dp * Np * out_itemsize       # output, double buffered
    tmp = bblk * (Dp * Np * 2                        # x value copy (worst case)
                  + Dp * Np * 4                      # reconstruction intermediate
                  + 6 * R * Np * 4                   # coefT / numer / denom / exp slabs
                  + 6 * R * Dp * 4                   # bases-side slabs
                  + 2 * R * (Np + Dp) * 2)           # bf16 operand copies
    return x_bufs + b_bufs + o_bufs + tmp + (4 << 20)   # + Mosaic internal-scratch headroom


@functools.partial(jax.jit,
                   static_argnames=("MD_S", "MD_R", "eval_steps", "inv_t", "out_dtype"))
def matrix_decomposition_2d(x_nchw, key, *, MD_S=1, MD_R=64, eval_steps=7,
                            inv_t=100.0, out_dtype=jnp.float32):
    """Forward pass of Matrix_Decomposition_2D_Base (NMF2D concrete ops, eval mode)."""
    # TODO(synk): only the eval / rand_init=True path is implemented; the cached
    # register_buffer('bases', ...) (rand_init=False) path and the training-step count of
    # the abstract base class are not translated.
    # NOTE: mmseg's concrete NMF2D overrides inv_t to 1; the default (100) follows the
    # abstract base-class signature -- pass inv_t=1.0 for canonical NMF2D behaviour.
    B, C, H, W = x_nchw.shape
    assert C % MD_S == 0
    D = C // MD_S
    N = H * W
    BS = B * MD_S
    R = MD_R

    # Pad N to a lane multiple (128) and D to a sublane multiple (8).  Zero padding is
    # exact for MU-NMF: padded coef columns / bases rows are zeroed by the first update
    # and never touch real entries.  (Real Ham-head D is typically already 128-aligned.)
    Np = -(-N // _LANE) * _LANE
    Dp = -(-D // _SUBLANE) * _SUBLANE

    # x as (BS, Dp, Np) bf16.  Under jit the reshape + cast + pad fuse into a single HBM
    # pass over x; ideally the upstream producer emits bf16 directly.
    x = x_nchw.reshape(BS, D, N).astype(jnp.bfloat16)
    if (Dp, Np) != (D, N):
        x = jnp.pad(x, ((0, 0), (0, Dp - D), (0, Np - N)))

    # _build_bases (rand_init=True): torch.rand (BS, D, R) + F.normalize(dim=1), passed
    # pre-transposed as (BS, R, Dp) so the big D axis is lane-dense in-kernel.
    bases = jax.random.uniform(key, (BS, D, R), dtype=jnp.float32)
    norm = jnp.sqrt(jnp.sum(bases * bases, axis=1, keepdims=True))
    bases_t = jnp.swapaxes(bases / jnp.maximum(norm, 1e-12), 1, 2)      # (BS, R, D)
    if Dp != D:
        bases_t = jnp.pad(bases_t, ((0, 0), (0, 0), (0, Dp - D)))

    # Batch-block: largest bblk that (a) divides BS, (b) keeps the grid a multiple of the
    # TensorCore count on dual-core chips, (c) fits the per-generation VMEM budget.
    budget, cores = _tpu_budget()
    out_itemsize = jnp.dtype(out_dtype).itemsize
    bblk = 1
    for cand in range(min(BS, 8), 0, -1):
        if BS % cand:
            continue
        if cores > 1 and BS >= cores and (BS // cand) % cores != 0:
            continue
        if _vmem_bytes(cand, Dp, Np, R, out_itemsize) <= budget:
            bblk = cand
            break
    grid = (BS // bblk,)

    est = _vmem_bytes(bblk, Dp, Np, R, out_itemsize)
    vmem_limit = int(max(min(est, budget), min(32 << 20, budget)))

    kernel = functools.partial(_nmf2d_kernel, inv_t=float(inv_t), steps=int(eval_steps))

    out = pl.pallas_call(
        kernel,
        out_shape=jax.ShapeDtypeStruct((BS, Dp, Np), out_dtype),
        grid_spec=pltpu.PrefetchScalarGridSpec(
            num_scalar_prefetch=0,
            grid=grid,
            in_specs=[
                pl.BlockSpec((bblk, Dp, Np), lambda b: (b, 0, 0)),
                pl.BlockSpec((bblk, R, Dp), lambda b: (b, 0, 0)),
            ],
            out_specs=pl.BlockSpec((bblk, Dp, Np), lambda b: (b, 0, 0)),
        ),
        compiler_params=pltpu.CompilerParams(
            dimension_semantics=("parallel",),   # batch axis -> megacore sharding
            vmem_limit_bytes=vmem_limit,
        ),
    )(x, bases_t)

    if (Dp, Np) != (D, N):
        out = out[:, :D, :N]
    return out.reshape(B, C, H, W)


if __name__ == "__main__":
    key = jax.random.PRNGKey(0)
    kx, kb = jax.random.split(key)

    # small shapes: B=2, C=32, H=W=16 -> D=32, N=256 (MD_S=1, MD_R=8)
    B, C, H, W = 2, 32, 16, 16
    # NMF expects non-negative input (x is post-ReLU in the Ham head)
    x = jax.nn.relu(jax.random.normal(kx, (B, C, H, W), dtype=jnp.float32))

    y = matrix_decomposition_2d(x, kb, MD_S=1, MD_R=8, eval_steps=7, inv_t=100.0)
    jax.block_until_ready(y)

    assert y.shape == (B, C, H, W)
    assert y.dtype == jnp.float32
    assert bool(jnp.all(jnp.isfinite(y)))
    print("KERNEL_OK")
</pallas_src>

<mosaic_0001>
module attributes {stable_mosaic.version = 11 : i64} {
  func.func @_nmf2d_kernel(%arg0: i32, %arg1: memref<2x32x256xbf16, #tpu.memory_space<vmem>>, %arg2: memref<2x8x32xf32, #tpu.memory_space<vmem>>, %arg3: memref<2x32x256xf32, #tpu.memory_space<vmem>>) attributes {dimension_semantics = [#tpu.dimension_semantics<parallel>], iteration_bounds = array<i64: 1>, scalar_prefetch = 0 : i64, scratch_operands = 0 : i64, tpu.core_type = #tpu.core_type<tc>, window_params = [{transform_indices = @transform_0, window_bounds = array<i64: 2, 32, 256>}, {transform_indices = @transform_1, window_bounds = array<i64: 2, 8, 32>}, {transform_indices = @transform_2, window_bounds = array<i64: 2, 32, 256>}]} {
    %c0 = arith.constant 0 : index
    %c0_0 = arith.constant 0 : index
    %c0_1 = arith.constant 0 : index
    %0 = vector.load %arg1[%c0, %c0_0, %c0_1] : memref<2x32x256xbf16, #tpu.memory_space<vmem>>, vector<2x32x256xbf16>
    %c0_2 = arith.constant 0 : index
    %c0_3 = arith.constant 0 : index
    %c0_4 = arith.constant 0 : index
    %1 = vector.load %arg2[%c0_2, %c0_3, %c0_4] : memref<2x8x32xf32, #tpu.memory_space<vmem>>, vector<2x8x32xf32>
    %2 = arith.truncf %1 : vector<2x8x32xf32> to vector<2x8x32xbf16>
    "tpu.trace_start"() <{level = 10 : i32, message = "brd,bdn->brn"}> : () -> ()
    %cst = arith.constant dense<0.000000e+00> : vector<2x8x256xf32>
    %3 = tpu.matmul %2, %0, %cst {dimension_numbers = #tpu.dot_dimension_numbers<[2], [1], [1], [2], [0, 0, 0, 1, 1, 2], [0], [0]>} : vector<2x8x32xbf16>, vector<2x32x256xbf16>, vector<2x8x256xf32> -> vector<2x8x256xf32>
    "tpu.trace_stop"() : () -> ()
    %cst_5 = arith.constant 1.000000e+02 : f32
    %4 = vector.broadcast %cst_5 : f32 to vector<2x8x256xf32>
    %5 = arith.mulf %4, %3 : vector<2x8x256xf32>
    %cst_6 = arith.constant dense<0xFF800000> : vector<2x256xf32>
    %6 = vector.multi_reduction <maximumf>, %5, %cst_6 [1] : vector<2x8x256xf32> to vector<2x256xf32>
    %7 = vector.shape_cast %6 : vector<2x256xf32> to vector<2x1x256xf32>
    %8 = vector.broadcast %7 : vector<2x1x256xf32> to vector<2x8x256xf32>
    %9 = arith.subf %5, %8 : vector<2x8x256xf32>
    %10 = math.exp %9 : vector<2x8x256xf32>
    %cst_7 = arith.constant dense<0.000000e+00> : vector<2x256xf32>
    %11 = vector.multi_reduction <add>, %10, %cst_7 [1] : vector<2x8x256xf32> to vector<2x256xf32>
    %12 = vector.shape_cast %11 : vector<2x256xf32> to vector<2x1x256xf32>
    %13 = vector.broadcast %12 : vector<2x1x256xf32> to vector<2x8x256xf32>
    %14 = arith.divf %10, %13 : vector<2x8x256xf32>
    %c0_i32 = arith.constant 0 : i32
    %c7_i32 = arith.constant 7 : i32
    %15 = arith.addi %c0_i32, %c7_i32 : i32
    %c1_i32 = arith.constant 1 : i32
    %16:3 = scf.for %arg4 = %c0_i32 to %15 step %c1_i32 iter_args(%arg5 = %14, %arg6 = %1, %arg7 = %3) -> (vector<2x8x256xf32>, vector<2x8x32xf32>, vector<2x8x256xf32>)  : i32 {
      "tpu.trace_start"() <{level = 10 : i32, message = "brd,bsd->brs"}> : () -> ()
      %cst_15 = arith.constant dense<0.000000e+00> : vector<2x8x8xf32>
      %28 = tpu.matmul %arg6, %arg6, %cst_15 {dimension_numbers = #tpu.dot_dimension_numbers<[2], [2], [1], [1], [0, 0, 0, 1, 1, 1], [0], [0]>} : vector<2x8x32xf32>, vector<2x8x32xf32>, vector<2x8x8xf32> -> vector<2x8x8xf32>
      "tpu.trace_stop"() : () -> ()
      "tpu.trace_start"() <{level = 10 : i32, message = "brs,bsn->brn"}> : () -> ()
      %cst_16 = arith.constant dense<0.000000e+00> : vector<2x8x256xf32>
      %29 = tpu.matmul %28, %arg5, %cst_16 {dimension_numbers = #tpu.dot_dimension_numbers<[2], [1], [1], [2], [0, 0, 0, 1, 1, 2], [0], [0]>} : vector<2x8x8xf32>, vector<2x8x256xf32>, vector<2x8x256xf32> -> vector<2x8x256xf32>
      "tpu.trace_stop"() : () -> ()
      %30 = arith.mulf %arg5, %arg7 : vector<2x8x256xf32>
      %cst_17 = arith.constant 9.99999997E-7 : f32
      %31 = vector.broadcast %cst_17 : f32 to vector<2x8x256xf32>
      %32 = arith.addf %29, %31 : vector<2x8x256xf32>
      %33 = tpu.reciprocal %32 {approx = true} : vector<2x8x256xf32> -> vector<2x8x256xf32>
      %34 = arith.mulf %30, %33 : vector<2x8x256xf32>
      %35 = arith.truncf %34 : vector<2x8x256xf32> to vector<2x8x256xbf16>
      "tpu.trace_start"() <{level = 10 : i32, message = "brn,bdn->brd"}> : () -> ()
      %cst_18 = arith.constant dense<0.000000e+00> : vector<2x8x32xf32>
      %36 = tpu.matmul %35, %0, %cst_18 {dimension_numbers = #tpu.dot_dimension_numbers<[2], [2], [1], [1], [0, 0, 0, 1, 1, 1], [0], [0]>} : vector<2x8x256xbf16>, vector<2x32x256xbf16>, vector<2x8x32xf32> -> vector<2x8x32xf32>
      "tpu.trace_stop"() : () -> ()
      "tpu.trace_start"() <{level = 10 : i32, message = "brn,bsn->brs"}> : () -> ()
      %cst_19 = arith.constant dense<0.000000e+00> : vector<2x8x8xf32>
      %37 = tpu.matmul %34, %34, %cst_19 {dimension_numbers = #tpu.dot_dimension_numbers<[2], [2], [1], [1], [0, 0, 0, 1, 1, 1], [0], [0]>} : vector<2x8x256xf32>, vector<2x8x256xf32>, vector<2x8x8xf32> -> vector<2x8x8xf32>
      "tpu.trace_stop"() : () -> ()
      "tpu.trace_start"() <{level = 10 : i32, message = "brs,bsd->brd"}> : () -> ()
      %cst_20 = arith.constant dense<0.000000e+00> : vector<2x8x32xf32>
      %38 = tpu.matmul %37, %arg6, %cst_20 {dimension_numbers = #tpu.dot_dimension_numbers<[2], [1], [1], [2], [0, 0, 0, 1, 1, 2], [0], [0]>} : vector<2x8x8xf32>, vector<2x8x32xf32>, vector<2x8x32xf32> -> vector<2x8x32xf32>
      "tpu.trace_stop"() : () -> ()
      %39 = arith.mulf %arg6, %36 : vector<2x8x32xf32>
      %cst_21 = arith.constant 9.99999997E-7 : f32
      %40 = vector.broadcast %cst_21 : f32 to vector<2x8x32xf32>
      %41 = arith.addf %38, %40 : vector<2x8x32xf32>
      %42 = tpu.reciprocal %41 {approx = true} : vector<2x8x32xf32> -> vector<2x8x32xf32>
      %43 = arith.mulf %39, %42 : vector<2x8x32xf32>
      %44 = arith.truncf %43 : vector<2x8x32xf32> to vector<2x8x32xbf16>
      "tpu.trace_start"() <{level = 10 : i32, message = "brd,bdn->brn"}> : () -> ()
      %cst_22 = arith.constant dense<0.000000e+00> : vector<2x8x256xf32>
      %45 = tpu.matmul %44, %0, %cst_22 {dimension_numbers = #tpu.dot_dimension_numbers<[2], [1], [1], [2], [0, 0, 0, 1, 1, 2], [0], [0]>} : vector<2x8x32xbf16>, vector<2x32x256xbf16>, vector<2x8x256xf32> -> vector<2x8x256xf32>
      "tpu.trace_stop"() : () -> ()
      scf.yield %34, %43, %45 : vector<2x8x256xf32>, vector<2x8x32xf32>, vector<2x8x256xf32>
    }
    "tpu.trace_start"() <{level = 10 : i32, message = "brd,bsd->brs"}> : () -> ()
    %cst_8 = arith.constant dense<0.000000e+00> : vector<2x8x8xf32>
    %17 = tpu.matmul %16#1, %16#1, %cst_8 {dimension_numbers = #tpu.dot_dimension_numbers<[2], [2], [1], [1], [0, 0, 0, 1, 1, 1], [0], [0]>} : vector<2x8x32xf32>, vector<2x8x32xf32>, vector<2x8x8xf32> -> vector<2x8x8xf32>
    "tpu.trace_stop"() : () -> ()
    "tpu.trace_start"() <{level = 10 : i32, message = "brs,bsn->brn"}> : () -> ()
    %cst_9 = arith.constant dense<0.000000e+00> : vector<2x8x256xf32>
    %18 = tpu.matmul %17, %16#0, %cst_9 {dimension_numbers = #tpu.dot_dimension_numbers<[2], [1], [1], [2], [0, 0, 0, 1, 1, 2], [0], [0]>} : vector<2x8x8xf32>, vector<2x8x256xf32>, vector<2x8x256xf32> -> vector<2x8x256xf32>
    "tpu.trace_stop"() : () -> ()
    %19 = arith.mulf %16#0, %16#2 : vector<2x8x256xf32>
    %cst_10 = arith.constant 9.99999997E-7 : f32
    %20 = vector.broadcast %cst_10 : f32 to vector<2x8x256xf32>
    %21 = arith.addf %18, %20 : vector<2x8x256xf32>
    %22 = arith.divf %19, %21 : vector<2x8x256xf32>
    %23 = tpu.transpose %16#1, [0, 2, 1] : vector<2x8x32xf32> -> vector<2x32x8xf32>
    %24 = arith.truncf %23 : vector<2x32x8xf32> to vector<2x32x8xbf16>
    %25 = arith.truncf %22 : vector<2x8x256xf32> to vector<2x8x256xbf16>
    "tpu.trace_start"() <{level = 10 : i32, message = "bdr,brn->bdn"}> : () -> ()
    %cst_11 = arith.constant dense<0.000000e+00> : vector<2x32x256xf32>
    %26 = tpu.matmul %24, %25, %cst_11 {dimension_numbers = #tpu.dot_dimension_numbers<[2], [1], [1], [2], [0, 0, 0, 1, 1, 2], [0], [0]>} : vector<2x32x8xbf16>, vector<2x8x256xbf16>, vector<2x32x256xf32> -> vector<2x32x256xf32>
    "tpu.trace_stop"() : () -> ()
    %c0_12 = arith.constant 0 : index
    %c0_13 = arith.constant 0 : index
    %c0_14 = arith.constant 0 : index
    %27 = vector.load %arg3[%c0_12, %c0_13, %c0_14] : memref<2x32x256xf32, #tpu.memory_space<vmem>>, vector<2x32x256xf32>
    tpu.vector_store %arg3[%c0_12, %c0_13, %c0_14], %26 {strides = array<i32>} : memref<2x32x256xf32, #tpu.memory_space<vmem>>, vector<2x32x256xf32>,
    return
  }
  func.func @transform_0(%arg0: i32) -> (i32, i32, i32) {
    %c0_i32 = arith.constant 0 : i32
    %c0_i32_0 = arith.constant 0 : i32
    %c0_i32_1 = arith.constant 0 : i32
    return %arg0, %c0_i32, %c0_i32_0 : i32, i32, i32
  }
  func.func @transform_1(%arg0: i32) -> (i32, i32, i32) {
    %c0_i32 = arith.constant 0 : i32
    %c0_i32_0 = arith.constant 0 : i32
    %c0_i32_1 = arith.constant 0 : i32
    return %arg0, %c0_i32, %c0_i32_0 : i32, i32, i32
  }
  func.func @transform_2(%arg0: i32) -> (i32, i32, i32) {
    %c0_i32 = arith.constant 0 : i32
    %c0_i32_0 = arith.constant 0 : i32
    %c0_i32_1 = arith.constant 0 : i32
    return %arg0, %c0_i32, %c0_i32_0 : i32, i32, i32
  }
}

</mosaic_0001>

<llo_original>
// kernel: matrix_decomposition_2d.1
$region0: #{matrix_decomposition_2d.1}
  #allocation0 [shape = 'u32[]', space=smem, size = 0x4, offset = 0x4, fixed_abs, tag = 'smem constant byte address 0x4 - core index']
  #allocation1 [shape = 'u32[144,128]{1,0:T(1,128)}', space=vmem, size = 0x12000, scoped, tag = 'internal scratch']
  %s0 = inlined_call_operand.vmem [shape: bf16[2,32,256], index: 0, kind: input, shape index: {}]
  %s1 = inlined_call_operand.vmem [shape: f32[2,8,32], index: 1, kind: input, shape index: {}]
  %s2 = inlined_call_operand.vmem [shape: f32[2,32,256], index: 2, kind: output, shape index: {}]
  %s3 = sld [smem:[#allocation0]]
  $region25: #{matrix_decomposition_2d.1} parent=0
    _
  %s5 = ssub.s32 1, %s3
  %s6 = scalar_select 0, %s5, %s3
  // Predicated region
  $region2: #{matrix_decomposition_2d.1} parent=0 // pred_check
    _
  $region3: #{matrix_decomposition_2d.1} parent=0 // pred_check_branch
    %8 = sbr.rel (0) target = $region5
  $region4: #{matrix_decomposition_2d.1} parent=0 // pred_region
    _
  $region5: #{matrix_decomposition_2d.1} parent=0 // pred_fallthru
    _
  // Predicated region
  $region6: #{matrix_decomposition_2d.1} parent=0 // pred_check
    _
  $region7: #{matrix_decomposition_2d.1} parent=0 // pred_check_branch
    %10 = sbr.rel (0) target = $region9
  $region8: #{matrix_decomposition_2d.1} parent=0 // pred_region
    _
  $region9: #{matrix_decomposition_2d.1} parent=0 // pred_fallthru
    _
  %v12 = vld [vmem:[%s0] sm:$0xff]
  %v13 = vld [vmem:[%s0 + $0x8] sm:$0xff]
  %v14 = vld [vmem:[%s0 + $0x10] sm:$0xff]
  %v15 = vld [vmem:[%s0 + $0x18] sm:$0xff]
  %v16 = vld [vmem:[%s0 + $0x20] sm:$0xff]
  %v17 = vld [vmem:[%s0 + $0x28] sm:$0xff]
  %v18 = vld [vmem:[%s0 + $0x30] sm:$0xff]
  %v19 = vld [vmem:[%s0 + $0x38] sm:$0xff]
  %v20 = vld [vmem:[%s1] sm:$0xff]
  %v21 = vld [vmem:[%s1 + $0x8] sm:$0xff]
  %v22 = vpack.c.bf16 %v20, %v20
  %v23 = vpack.c.bf16 %v21, %v21
  %v28 = vunpack.c.l.b16 %v12
  %v29 = vunpack.c.h.b16 %v12
  %v30 = vunpack.c.l.b16 %v13
  %v31 = vunpack.c.h.b16 %v13
  %v32 = vunpack.c.l.b16 %v14
  %v33 = vunpack.c.h.b16 %v14
  %v34 = vunpack.c.l.b16 %v15
  %v35 = vunpack.c.h.b16 %v15
  %v36 = vpack.c.b16 %v30, %v28
  %v37 = vpack.c.b16 %v31, %v29
  %v38 = vpack.c.b16 %v34, %v32
  %v39 = vpack.c.b16 %v35, %v33
  %vm44 = vcmask 261120
  %v46 = vsel %vm44, %v22, 0
  %48 = vmatprep.subr.bf16.mxu0 0
  %49 = vmatpush1.bf16.msra.mxu0 0
  %50 = vmatprep.subr.bf16.mxu0 0
  %51 = vmatpush1.bf16.msra.mxu0 0
  %52 = vmatprep.subr.bf16.mxu0 0
  %53 = vmatpush1.bf16.msra.mxu0 0
  %54 = vmatprep.subr.bf16.mxu0 0
  %55 = vmatpush1.bf16.msra.mxu0 0
  %56 = vmatprep.subr.bf16.mxu0 0
  %57 = vmatpush1.bf16.msra.mxu0 0
  %58 = vmatprep.subr.bf16.mxu0 0
  %59 = vmatpush1.bf16.msra.mxu0 0
  %60 = vmatprep.subr.bf16.mxu0 %v39
  %61 = vmatpush1.bf16.msra.mxu0 %v38
  %62 = vmatprep.subr.bf16.mxu0 %v37
  %63 = vmatpush1.bf16.msra.mxu0 %v36
  %64 = vmatprep.subr.bf16.mxu0 0
  %65 = vmatpush2.bf16.msra.mxu0 0
  %66 = vmatprep.subr.bf16.mxu0 0
  %67 = vmatpush2.bf16.msra.mxu0 0
  %68 = vmatprep.subr.bf16.mxu0 0
  %69 = vmatpush2.bf16.msra.mxu0 0
  %70 = vmatprep.subr.bf16.mxu0 0
  %71 = vmatpush2.bf16.msra.mxu0 0
  %72 = vmatprep.subr.bf16.mxu0 0
  %73 = vmatpush2.bf16.msra.mxu0 0
  %74 = vmatprep.subr.bf16.mxu0 0
  %75 = vmatpush2.bf16.msra.mxu0 0
  %76 = vmatprep.subr.bf16.mxu0 0
  %77 = vmatpush2.bf16.msra.mxu0 0
  %78 = vmatprep.subr.bf16.mxu0 0
  %79 = vmatpush2.bf16.msra.mxu0 0
  %80 = vmatprep.mubr.bf16.mxu0 0
  %81 = vmatmul.mubr.bf16.gmra.mxu0 %v46
  %v82 = vpop.f32.mrf.mxu0
  %v83 = vadd.f32 0.0, %v82
  %v84 = vpop.f32.mrf.mxu0
  %v85 = vadd.f32 0.0, %v84
  %v86 = vpop.f32.mrf.mxu0
  %v87 = vpop.f32.mrf.mxu0
  %88 = vdwg.mxu0
  %v93 = vunpack.c.l.b16 %v16
  %v94 = vunpack.c.h.b16 %v16
  %v95 = vunpack.c.l.b16 %v17
  %v96 = vunpack.c.h.b16 %v17
  %v97 = vunpack.c.l.b16 %v18
  %v98 = vunpack.c.h.b16 %v18
  %v99 = vunpack.c.l.b16 %v19
  %v100 = vunpack.c.h.b16 %v19
  %v101 = vpack.c.b16 %v95, %v93
  %v102 = vpack.c.b16 %v96, %v94
  %v103 = vpack.c.b16 %v99, %v97
  %v104 = vpack.c.b16 %v100, %v98
  %v110 = vsel %vm44, %v23, 0
  %112 = vmatprep.subr.bf16.mxu0 0
  %113 = vmatpush1.bf16.msra.mxu0 0
  %114 = vmatprep.subr.bf16.mxu0 0
  %115 = vmatpush1.bf16.msra.mxu0 0
  %116 = vmatprep.subr.bf16.mxu0 0
  %117 = vmatpush1.bf16.msra.mxu0 0
  %118 = vmatprep.subr.bf16.mxu0 0
  %119 = vmatpush1.bf16.msra.mxu0 0
  %120 = vmatprep.subr.bf16.mxu0 0
  %121 = vmatpush1.bf16.msra.mxu0 0
  %122 = vmatprep.subr.bf16.mxu0 0
  %123 = vmatpush1.bf16.msra.mxu0 0
  %124 = vmatprep.subr.bf16.mxu0 %v104
  %125 = vmatpush1.bf16.msra.mxu0 %v103
  %126 = vmatprep.subr.bf16.mxu0 %v102
  %127 = vmatpush1.bf16.msra.mxu0 %v101
  %128 = vmatprep.subr.bf16.mxu0 0
  %129 = vmatpush2.bf16.msra.mxu0 0
  %130 = vmatprep.subr.bf16.mxu0 0
  %131 = vmatpush2.bf16.msra.mxu0 0
  %132 = vmatprep.subr.bf16.mxu0 0
  %133 = vmatpush2.bf16.msra.mxu0 0
  %134 = vmatprep.subr.bf16.mxu0 0
  %135 = vmatpush2.bf16.msra.mxu0 0
  %136 = vmatprep.subr.bf16.mxu0 0
  %137 = vmatpush2.bf16.msra.mxu0 0
  %138 = vmatprep.subr.bf16.mxu0 0
  %139 = vmatpush2.bf16.msra.mxu0 0
  %140 = vmatprep.subr.bf16.mxu0 0
  %141 = vmatpush2.bf16.msra.mxu0 0
  %142 = vmatprep.subr.bf16.mxu0 0
  %143 = vmatpush2.bf16.msra.mxu0 0
  %144 = vmatprep.mubr.bf16.mxu0 0
  %145 = vmatmul.mubr.bf16.gmra.mxu0 %v110
  %v146 = vpop.f32.mrf.mxu0
  %v147 = vadd.f32 0.0, %v146
  %v148 = vpop.f32.mrf.mxu0
  %v149 = vadd.f32 0.0, %v148
  %v150 = vpop.f32.mrf.mxu0
  %v151 = vpop.f32.mrf.mxu0
  %152 = vdwg.mxu0
  %v153 = vmul.f32 %v83, 100.0
  %v154 = vmul.f32 %v85, 100.0
  %v155 = vmul.f32 %v147, 100.0
  %v156 = vmul.f32 %v149, 100.0
  %v157 = vrot.slane %v153, 4
  %v158 = vmax.f32 %v153, %v157
  %v159 = vrot.slane %v158, 2
  %v160 = vmax.f32 %v158, %v159
  %v161 = vrot.slane %v160, 1
  %v162 = vmax.f32 %v160, %v161
  %v163 = vrot.slane %v154, 4
  %v164 = vmax.f32 %v154, %v163
  %v165 = vrot.slane %v164, 2
  %v166 = vmax.f32 %v164, %v165
  %v167 = vrot.slane %v166, 1
  %v168 = vmax.f32 %v166, %v167
  %v169 = vrot.slane %v155, 4
  %v170 = vmax.f32 %v155, %v169
  %v171 = vrot.slane %v170, 2
  %v172 = vmax.f32 %v170, %v171
  %v173 = vrot.slane %v172, 1
  %v174 = vmax.f32 %v172, %v173
  %v175 = vrot.slane %v156, 4
  %v176 = vmax.f32 %v156, %v175
  %v177 = vrot.slane %v176, 2
  %v178 = vmax.f32 %v176, %v177
  %v179 = vrot.slane %v178, 1
  %v180 = vmax.f32 %v178, %v179
  %v181 = vsub.f32 %v153, %v162
  %v182 = vsub.f32 %v154, %v168
  %v183 = vsub.f32 %v155, %v174
  %v184 = vsub.f32 %v156, %v180
  %v185 = vmul.f32 %v181, 1.442695
  %v186 = vpow.pop %v185
  %v187 = vmul.f32 %v182, 1.442695
  %v188 = vpow.pop %v187
  %v189 = vmul.f32 %v183, 1.442695
  %v190 = vpow.pop %v189
  %v191 = vmul.f32 %v184, 1.442695
  %v192 = vpow.pop %v191
  %v193 = vrot.slane %v186, 4
  %v194 = vadd.f32 %v186, %v193
  %v195 = vrot.slane %v194, 2
  %v196 = vadd.f32 %v194, %v195
  %v197 = vrot.slane %v196, 1
  %v198 = vadd.f32 %v196, %v197
  %v199 = vrot.slane %v188, 4
  %v200 = vadd.f32 %v188, %v199
  %v201 = vrot.slane %v200, 2
  %v202 = vadd.f32 %v200, %v201
  %v203 = vrot.slane %v202, 1
  %v204 = vadd.f32 %v202, %v203
  %v205 = vrot.slane %v190, 4
  %v206 = vadd.f32 %v190, %v205
  %v207 = vrot.slane %v206, 2
  %v208 = vadd.f32 %v206, %v207
  %v209 = vrot.slane %v208, 1
  %v210 = vadd.f32 %v208, %v209
  %v211 = vrot.slane %v192, 4
  %v212 = vadd.f32 %v192, %v211
  %v213 = vrot.slane %v212, 2
  %v214 = vadd.f32 %v212, %v213
  %v215 = vrot.slane %v214, 1
  %v216 = vadd.f32 %v214, %v215
  %v217 = vrcp.pop %v198
  %v218 = vmul.f32 %v186, %v217
  %v219 = vrcp.pop %v204
  %v220 = vmul.f32 %v188, %v219
  %v221 = vrcp.pop %v210
  %v222 = vmul.f32 %v190, %v221
  %v223 = vrcp.pop %v216
  %v224 = vmul.f32 %v192, %v223
  loop: start=0, step=1, limit=7
  $region10: #{matrix_decomposition_2d.1} parent=0 // loop_pre_header
    _
  $region11: #{matrix_decomposition_2d.1} parent=0 // loop_header
    %s226 = sphi 0, %s230
    %p227 = scmp.ge.s32.totalorder %s226, 7
    %v231 = vphi %v218, %v544
    %v232 = vphi %v220, %v545
    %v233 = vphi %v222, %v546
    %v234 = vphi %v224, %v547
    %v235 = vphi %v20, %v922
    %v236 = vphi %v21, %v923
    %v237 = vphi %v83, %v964
    %v238 = vphi %v85, %v966
    %v239 = vphi %v147, %v1008
    %v240 = vphi %v149, %v1010
  $region12: #{matrix_decomposition_2d.1} parent=0 // loop_header_branch
    %229 = sbr.rel (%p227) target = $region16
  $region13: #{matrix_decomposition_2d.1} parent=0 // loop_body
    %v242 = vsel %vm44, %v235, 0
    %244 = vmatprep.subr.mxu0 0.0
    %245 = vmatpush1.xpose.msra.mxu0 0.0
    %246 = vmatprep.subr.mxu0 0.0
    %247 = vmatpush1.xpose.msra.mxu0 0.0
    %248 = vmatprep.subr.mxu0 0.0
    %249 = vmatpush1.xpose.msra.mxu0 0.0
    %250 = vmatprep.subr.mxu0 0.0
    %251 = vmatpush1.xpose.msra.mxu0 0.0
    %252 = vmatprep.subr.mxu0 0.0
    %253 = vmatpush1.xpose.msra.mxu0 0.0
    %254 = vmatprep.subr.mxu0 0.0
    %255 = vmatpush1.xpose.msra.mxu0 0.0
    %256 = vmatprep.subr.mxu0 0.0
    %257 = vmatpush1.xpose.msra.mxu0 0.0
    %258 = vmatprep.subr.mxu0 0.0
    %259 = vmatpush1.xpose.msra.mxu0 0.0
    %260 = vmatprep.subr.mxu0 0.0
    %261 = vmatpush1.xpose.msra.mxu0 0.0
    %262 = vmatprep.subr.mxu0 0.0
    %263 = vmatpush1.xpose.msra.mxu0 0.0
    %264 = vmatprep.subr.mxu0 0.0
    %265 = vmatpush1.xpose.msra.mxu0 0.0
    %266 = vmatprep.subr.mxu0 0.0
    %267 = vmatpush1.xpose.msra.mxu0 0.0
    %268 = vmatprep.subr.mxu0 0.0
    %269 = vmatpush1.xpose.msra.mxu0 0.0
    %270 = vmatprep.subr.mxu0 0.0
    %271 = vmatpush1.xpose.msra.mxu0 0.0
    %272 = vmatprep.subr.mxu0 0.0
    %273 = vmatpush1.xpose.msra.mxu0 0.0
    %274 = vmatprep.subr.mxu0 0.0
    %275 = vmatpush1.xpose.msra.mxu0 %v242
    %276 = vmatprep.subr.mxu0 0.0
    %277 = vmatpush2.xpose.msra.mxu0 0.0
    %278 = vmatprep.subr.mxu0 0.0
    %279 = vmatpush2.xpose.msra.mxu0 0.0
    %280 = vmatprep.subr.mxu0 0.0
    %281 = vmatpush2.xpose.msra.mxu0 0.0
    %282 = vmatprep.subr.mxu0 0.0
    %283 = vmatpush2.xpose.msra.mxu0 0.0
    %284 = vmatprep.subr.mxu0 0.0
    %285 = vmatpush2.xpose.msra.mxu0 0.0
    %286 = vmatprep.subr.mxu0 0.0
    %287 = vmatpush2.xpose.msra.mxu0 0.0
    %288 = vmatprep.subr.mxu0 0.0
    %289 = vmatpush2.xpose.msra.mxu0 0.0
    %290 = vmatprep.subr.mxu0 0.0
    %291 = vmatpush2.xpose.msra.mxu0 0.0
    %292 = vmatprep.subr.mxu0 0.0
    %293 = vmatpush2.xpose.msra.mxu0 0.0
    %294 = vmatprep.subr.mxu0 0.0
    %295 = vmatpush2.xpose.msra.mxu0 0.0
    %296 = vmatprep.subr.mxu0 0.0
    %297 = vmatpush2.xpose.msra.mxu0 0.0
    %298 = vmatprep.subr.mxu0 0.0
    %299 = vmatpush2.xpose.msra.mxu0 0.0
    %300 = vmatprep.subr.mxu0 0.0
    %301 = vmatpush2.xpose.msra.mxu0 0.0
    %302 = vmatprep.subr.mxu0 0.0
    %303 = vmatpush2.xpose.msra.mxu0 0.0
    %304 = vmatprep.subr.mxu0 0.0
    %305 = vmatpush2.xpose.msra.mxu0 0.0
    %306 = vmatprep.subr.mxu0 0.0
    %307 = vmatpush2.xpose.msra.mxu0 0.0
    %308 = vmatprep.mubr.f32.mxu0 0.0
    %309 = vmatmul.mubr.f32.gmra.mxu0 %v242
    %v310 = vpop.f32.mrf.mxu0
    %v311 = vadd.f32 0.0, %v310
    %v312 = vpop.f32.mrf.mxu0
    %313 = vdwg.mxu0
    %v315 = vsel %vm44, %v236, 0
    %317 = vmatprep.subr.mxu0 0.0
    %318 = vmatpush1.xpose.msra.mxu0 0.0
    %319 = vmatprep.subr.mxu0 0.0
    %320 = vmatpush1.xpose.msra.mxu0 0.0
    %321 = vmatprep.subr.mxu0 0.0
    %322 = vmatpush1.xpose.msra.mxu0 0.0
    %323 = vmatprep.subr.mxu0 0.0
    %324 = vmatpush1.xpose.msra.mxu0 0.0
    %325 = vmatprep.subr.mxu0 0.0
    %326 = vmatpush1.xpose.msra.mxu0 0.0
    %327 = vmatprep.subr.mxu0 0.0
    %328 = vmatpush1.xpose.msra.mxu0 0.0
    %329 = vmatprep.subr.mxu0 0.0
    %330 = vmatpush1.xpose.msra.mxu0 0.0
    %331 = vmatprep.subr.mxu0 0.0
    %332 = vmatpush1.xpose.msra.mxu0 0.0
    %333 = vmatprep.subr.mxu0 0.0
    %334 = vmatpush1.xpose.msra.mxu0 0.0
    %335 = vmatprep.subr.mxu0 0.0
    %336 = vmatpush1.xpose.msra.mxu0 0.0
    %337 = vmatprep.subr.mxu0 0.0
    %338 = vmatpush1.xpose.msra.mxu0 0.0
    %339 = vmatprep.subr.mxu0 0.0
    %340 = vmatpush1.xpose.msra.mxu0 0.0
    %341 = vmatprep.subr.mxu0 0.0
    %342 = vmatpush1.xpose.msra.mxu0 0.0
    %343 = vmatprep.subr.mxu0 0.0
    %344 = vmatpush1.xpose.msra.mxu0 0.0
    %345 = vmatprep.subr.mxu0 0.0
    %346 = vmatpush1.xpose.msra.mxu0 0.0
    %347 = vmatprep.subr.mxu0 0.0
    %348 = vmatpush1.xpose.msra.mxu0 %v315
    %349 = vmatprep.subr.mxu0 0.0
    %350 = vmatpush2.xpose.msra.mxu0 0.0
    %351 = vmatprep.subr.mxu0 0.0
    %352 = vmatpush2.xpose.msra.mxu0 0.0
    %353 = vmatprep.subr.mxu0 0.0
    %354 = vmatpush2.xpose.msra.mxu0 0.0
    %355 = vmatprep.subr.mxu0 0.0
    %356 = vmatpush2.xpose.msra.mxu0 0.0
    %357 = vmatprep.subr.mxu0 0.0
    %358 = vmatpush2.xpose.msra.mxu0 0.0
    %359 = vmatprep.subr.mxu0 0.0
    %360 = vmatpush2.xpose.msra.mxu0 0.0
    %361 = vmatprep.subr.mxu0 0.0
    %362 = vmatpush2.xpose.msra.mxu0 0.0
    %363 = vmatprep.subr.mxu0 0.0
    %364 = vmatpush2.xpose.msra.mxu0 0.0
    %365 = vmatprep.subr.mxu0 0.0
    %366 = vmatpush2.xpose.msra.mxu0 0.0
    %367 = vmatprep.subr.mxu0 0.0
    %368 = vmatpush2.xpose.msra.mxu0 0.0
    %369 = vmatprep.subr.mxu0 0.0
    %370 = vmatpush2.xpose.msra.mxu0 0.0
    %371 = vmatprep.subr.mxu0 0.0
    %372 = vmatpush2.xpose.msra.mxu0 0.0
    %373 = vmatprep.subr.mxu0 0.0
    %374 = vmatpush2.xpose.msra.mxu0 0.0
    %375 = vmatprep.subr.mxu0 0.0
    %376 = vmatpush2.xpose.msra.mxu0 0.0
    %377 = vmatprep.subr.mxu0 0.0
    %378 = vmatpush2.xpose.msra.mxu0 0.0
    %379 = vmatprep.subr.mxu0 0.0
    %380 = vmatpush2.xpose.msra.mxu0 0.0
    %381 = vmatprep.mubr.f32.mxu0 0.0
    %382 = vmatmul.mubr.f32.gmra.mxu0 %v315
    %v383 = vpop.f32.mrf.mxu0
    %v384 = vadd.f32 0.0, %v383
    %v385 = vpop.f32.mrf.mxu0
    %386 = vdwg.mxu0
    %v387 = vmul.f32 %v231, %v237
    %v388 = vmul.f32 %v232, %v238
    %v389 = vmul.f32 %v233, %v239
    %v390 = vmul.f32 %v234, %v240
    %vm391 = vcmask 64512
    %v393 = vsel %vm391, %v311, 0
    %395 = vmatprep.subr.mxu0 0.0
    %396 = vmatpush1.msra.mxu0 0.0
    %397 = vmatprep.subr.mxu0 0.0
    %398 = vmatpush1.msra.mxu0 0.0
    %399 = vmatprep.subr.mxu0 0.0
    %400 = vmatpush1.msra.mxu0 0.0
    %401 = vmatprep.subr.mxu0 0.0
    %402 = vmatpush1.msra.mxu0 0.0
    %403 = vmatprep.subr.mxu0 0.0
    %404 = vmatpush1.msra.mxu0 0.0
    %405 = vmatprep.subr.mxu0 0.0
    %406 = vmatpush1.msra.mxu0 0.0
    %407 = vmatprep.subr.mxu0 0.0
    %408 = vmatpush1.msra.mxu0 0.0
    %409 = vmatprep.subr.mxu0 0.0
    %410 = vmatpush1.msra.mxu0 0.0
    %411 = vmatprep.subr.mxu0 0.0
    %412 = vmatpush1.msra.mxu0 0.0
    %413 = vmatprep.subr.mxu0 0.0
    %414 = vmatpush1.msra.mxu0 0.0
    %415 = vmatprep.subr.mxu0 0.0
    %416 = vmatpush1.msra.mxu0 0.0
    %417 = vmatprep.subr.mxu0 0.0
    %418 = vmatpush1.msra.mxu0 0.0
    %419 = vmatprep.subr.mxu0 0.0
    %420 = vmatpush1.msra.mxu0 0.0
    %421 = vmatprep.subr.mxu0 0.0
    %422 = vmatpush1.msra.mxu0 0.0
    %423 = vmatprep.subr.mxu0 0.0
    %424 = vmatpush1.msra.mxu0 0.0
    %425 = vmatprep.subr.mxu0 %v232
    %426 = vmatpush1.msra.mxu0 %v231
    %427 = vmatprep.subr.mxu0 0.0
    %428 = vmatpush2.msra.mxu0 0.0
    %429 = vmatprep.subr.mxu0 0.0
    %430 = vmatpush2.msra.mxu0 0.0
    %431 = vmatprep.subr.mxu0 0.0
    %432 = vmatpush2.msra.mxu0 0.0
    %433 = vmatprep.subr.mxu0 0.0
    %434 = vmatpush2.msra.mxu0 0.0
    %435 = vmatprep.subr.mxu0 0.0
    %436 = vmatpush2.msra.mxu0 0.0
    %437 = vmatprep.subr.mxu0 0.0
    %438 = vmatpush2.msra.mxu0 0.0
    %439 = vmatprep.subr.mxu0 0.0
    %440 = vmatpush2.msra.mxu0 0.0
    %441 = vmatprep.subr.mxu0 0.0
    %442 = vmatpush2.msra.mxu0 0.0
    %443 = vmatprep.subr.mxu0 0.0
    %444 = vmatpush2.msra.mxu0 0.0
    %445 = vmatprep.subr.mxu0 0.0
    %446 = vmatpush2.msra.mxu0 0.0
    %447 = vmatprep.subr.mxu0 0.0
    %448 = vmatpush2.msra.mxu0 0.0
    %449 = vmatprep.subr.mxu0 0.0
    %450 = vmatpush2.msra.mxu0 0.0
    %451 = vmatprep.subr.mxu0 0.0
    %452 = vmatpush2.msra.mxu0 0.0
    %453 = vmatprep.subr.mxu0 0.0
    %454 = vmatpush2.msra.mxu0 0.0
    %455 = vmatprep.subr.mxu0 0.0
    %456 = vmatpush2.msra.mxu0 0.0
    %457 = vmatprep.subr.mxu0 0.0
    %458 = vmatpush2.msra.mxu0 0.0
    %459 = vmatprep.mubr.f32.mxu0 0.0
    %460 = vmatmul.mubr.f32.gmra.mxu0 %v393
    %v461 = vpop.f32.mrf.mxu0
    %v462 = vadd.f32 1e-06, %v461
    %v463 = vpop.f32.mrf.mxu0
    %v464 = vadd.f32 1e-06, %v463
    %465 = vdwg.mxu0
    %v467 = vsel %vm391, %v384, 0
    %469 = vmatprep.subr.mxu0 0.0
    %470 = vmatpush1.msra.mxu0 0.0
    %471 = vmatprep.subr.mxu0 0.0
    %472 = vmatpush1.msra.mxu0 0.0
    %473 = vmatprep.subr.mxu0 0.0
    %474 = vmatpush1.msra.mxu0 0.0
    %475 = vmatprep.subr.mxu0 0.0
    %476 = vmatpush1.msra.mxu0 0.0
    %477 = vmatprep.subr.mxu0 0.0
    %478 = vmatpush1.msra.mxu0 0.0
    %479 = vmatprep.subr.mxu0 0.0
    %480 = vmatpush1.msra.mxu0 0.0
    %481 = vmatprep.subr.mxu0 0.0
    %482 = vmatpush1.msra.mxu0 0.0
    %483 = vmatprep.subr.mxu0 0.0
    %484 = vmatpush1.msra.mxu0 0.0
    %485 = vmatprep.subr.mxu0 0.0
    %486 = vmatpush1.msra.mxu0 0.0
    %487 = vmatprep.subr.mxu0 0.0
    %488 = vmatpush1.msra.mxu0 0.0
    %489 = vmatprep.subr.mxu0 0.0
    %490 = vmatpush1.msra.mxu0 0.0
    %491 = vmatprep.subr.mxu0 0.0
    %492 = vmatpush1.msra.mxu0 0.0
    %493 = vmatprep.subr.mxu0 0.0
    %494 = vmatpush1.msra.mxu0 0.0
    %495 = vmatprep.subr.mxu0 0.0
    %496 = vmatpush1.msra.mxu0 0.0
    %497 = vmatprep.subr.mxu0 0.0
    %498 = vmatpush1.msra.mxu0 0.0
    %499 = vmatprep.subr.mxu0 %v234
    %500 = vmatpush1.msra.mxu0 %v233
    %501 = vmatprep.subr.mxu0 0.0
    %502 = vmatpush2.msra.mxu0 0.0
    %503 = vmatprep.subr.mxu0 0.0
    %504 = vmatpush2.msra.mxu0 0.0
    %505 = vmatprep.subr.mxu0 0.0
    %506 = vmatpush2.msra.mxu0 0.0
    %507 = vmatprep.subr.mxu0 0.0
    %508 = vmatpush2.msra.mxu0 0.0
    %509 = vmatprep.subr.mxu0 0.0
    %510 = vmatpush2.msra.mxu0 0.0
    %511 = vmatprep.subr.mxu0 0.0
    %512 = vmatpush2.msra.mxu0 0.0
    %513 = vmatprep.subr.mxu0 0.0
    %514 = vmatpush2.msra.mxu0 0.0
    %515 = vmatprep.subr.mxu0 0.0
    %516 = vmatpush2.msra.mxu0 0.0
    %517 = vmatprep.subr.mxu0 0.0
    %518 = vmatpush2.msra.mxu0 0.0
    %519 = vmatprep.subr.mxu0 0.0
    %520 = vmatpush2.msra.mxu0 0.0
    %521 = vmatprep.subr.mxu0 0.0
    %522 = vmatpush2.msra.mxu0 0.0
    %523 = vmatprep.subr.mxu0 0.0
    %524 = vmatpush2.msra.mxu0 0.0
    %525 = vmatprep.subr.mxu0 0.0
    %526 = vmatpush2.msra.mxu0 0.0
    %527 = vmatprep.subr.mxu0 0.0
    %528 = vmatpush2.msra.mxu0 0.0
    %529 = vmatprep.subr.mxu0 0.0
    %530 = vmatpush2.msra.mxu0 0.0
    %531 = vmatprep.subr.mxu0 0.0
    %532 = vmatpush2.msra.mxu0 0.0
    %533 = vmatprep.mubr.f32.mxu0 0.0
    %534 = vmatmul.mubr.f32.gmra.mxu0 %v467
    %v535 = vpop.f32.mrf.mxu0
    %v536 = vadd.f32 1e-06, %v535
    %v537 = vpop.f32.mrf.mxu0
    %v538 = vadd.f32 1e-06, %v537
    %539 = vdwg.mxu0
    %v540 = vrcp.pop %v462
    %v541 = vrcp.pop %v464
    %v542 = vrcp.pop %v536
    %v543 = vrcp.pop %v538
    %v544 = vmul.f32 %v387, %v540
    %v545 = vmul.f32 %v388, %v541
    %v546 = vmul.f32 %v389, %v542
    %v547 = vmul.f32 %v390, %v543
    %v548 = vpack.c.bf16 %v544, %v544
    %v549 = vpack.c.bf16 %v545, %v545
    %v550 = vpack.c.bf16 %v546, %v546
    %v551 = vpack.c.bf16 %v547, %v547
    %552 = vmatprep.subr.bf16.mxu0 0
    %553 = vmatpush1.bf16.xpose.msra.mxu0 0
    %554 = vmatprep.subr.bf16.mxu0 0
    %555 = vmatpush1.bf16.xpose.msra.mxu0 0
    %556 = vmatprep.subr.bf16.mxu0 0
    %557 = vmatpush1.bf16.xpose.msra.mxu0 0
    %558 = vmatprep.subr.bf16.mxu0 0
    %559 = vmatpush1.bf16.xpose.msra.mxu0 0
    %560 = vmatprep.subr.bf16.mxu0 0
    %561 = vmatpush1.bf16.xpose.msra.mxu0 0
    %562 = vmatprep.subr.bf16.mxu0 0
    %563 = vmatpush1.bf16.xpose.msra.mxu0 0
    %564 = vmatprep.subr.bf16.mxu0 %v39
    %565 = vmatpush1.bf16.xpose.msra.mxu0 %v38
    %566 = vmatprep.subr.bf16.mxu0 %v37
    %567 = vmatpush1.bf16.xpose.msra.mxu0 %v36
    %568 = vmatprep.subr.bf16.mxu0 0
    %569 = vmatpush2.bf16.xpose.msra.mxu0 0
    %570 = vmatprep.subr.bf16.mxu0 0
    %571 = vmatpush2.bf16.xpose.msra.mxu0 0
    %572 = vmatprep.subr.bf16.mxu0 0
    %573 = vmatpush2.bf16.xpose.msra.mxu0 0
    %574 = vmatprep.subr.bf16.mxu0 0
    %575 = vmatpush2.bf16.xpose.msra.mxu0 0
    %576 = vmatprep.subr.bf16.mxu0 0
    %577 = vmatpush2.bf16.xpose.msra.mxu0 0
    %578 = vmatprep.subr.bf16.mxu0 0
    %579 = vmatpush2.bf16.xpose.msra.mxu0 0
    %580 = vmatprep.subr.bf16.mxu0 0
    %581 = vmatpush2.bf16.xpose.msra.mxu0 0
    %582 = vmatprep.subr.bf16.mxu0 0
    %583 = vmatpush2.bf16.xpose.msra.mxu0 0
    %584 = vmatprep.mubr.bf16.mxu0 %v549
    %585 = vmatmul.mubr.bf16.gmra.mxu0 %v548
    %v586 = vpop.f32.mrf.mxu0
    %v587 = vadd.f32 0.0, %v586
    %v588 = vpop.f32.mrf.mxu0
    %v589 = vpop.f32.mrf.mxu0
    %v590 = vpop.f32.mrf.mxu0
    %591 = vdwg.mxu0
    %592 = vmatprep.subr.bf16.mxu0 0
    %593 = vmatpush1.bf16.xpose.msra.mxu0 0
    %594 = vmatprep.subr.bf16.mxu0 0
    %595 = vmatpush1.bf16.xpose.msra.mxu0 0
    %596 = vmatprep.subr.bf16.mxu0 0
    %597 = vmatpush1.bf16.xpose.msra.mxu0 0
    %598 = vmatprep.subr.bf16.mxu0 0
    %599 = vmatpush1.bf16.xpose.msra.mxu0 0
    %600 = vmatprep.subr.bf16.mxu0 0
    %601 = vmatpush1.bf16.xpose.msra.mxu0 0
    %602 = vmatprep.subr.bf16.mxu0 0
    %603 = vmatpush1.bf16.xpose.msra.mxu0 0
    %604 = vmatprep.subr.bf16.mxu0 %v104
    %605 = vmatpush1.bf16.xpose.msra.mxu0 %v103
    %606 = vmatprep.subr.bf16.mxu0 %v102
    %607 = vmatpush1.bf16.xpose.msra.mxu0 %v101
    %608 = vmatprep.subr.bf16.mxu0 0
    %609 = vmatpush2.bf16.xpose.msra.mxu0 0
    %610 = vmatprep.subr.bf16.mxu0 0
    %611 = vmatpush2.bf16.xpose.msra.mxu0 0
    %612 = vmatprep.subr.bf16.mxu0 0
    %613 = vmatpush2.bf16.xpose.msra.mxu0 0
    %614 = vmatprep.subr.bf16.mxu0 0
    %615 = vmatpush2.bf16.xpose.msra.mxu0 0
    %616 = vmatprep.subr.bf16.mxu0 0
    %617 = vmatpush2.bf16.xpose.msra.mxu0 0
    %618 = vmatprep.subr.bf16.mxu0 0
    %619 = vmatpush2.bf16.xpose.msra.mxu0 0
    %620 = vmatprep.subr.bf16.mxu0 0
    %621 = vmatpush2.bf16.xpose.msra.mxu0 0
    %622 = vmatprep.subr.bf16.mxu0 0
    %623 = vmatpush2.bf16.xpose.msra.mxu0 0
    %624 = vmatprep.mubr.bf16.mxu0 %v551
    %625 = vmatmul.mubr.bf16.gmra.mxu0 %v550
    %v626 = vpop.f32.mrf.mxu0
    %v627 = vadd.f32 0.0, %v626
    %v628 = vpop.f32.mrf.mxu0
    %v629 = vpop.f32.mrf.mxu0
    %v630 = vpop.f32.mrf.mxu0
    %631 = vdwg.mxu0
    %632 = vmatprep.subr.mxu0 0.0
    %633 = vmatpush1.xpose.msra.mxu0 0.0
    %634 = vmatprep.subr.mxu0 0.0
    %635 = vmatpush1.xpose.msra.mxu0 0.0
    %636 = vmatprep.subr.mxu0 0.0
    %637 = vmatpush1.xpose.msra.mxu0 0.0
    %638 = vmatprep.subr.mxu0 0.0
    %639 = vmatpush1.xpose.msra.mxu0 0.0
    %640 = vmatprep.subr.mxu0 0.0
    %641 = vmatpush1.xpose.msra.mxu0 0.0
    %642 = vmatprep.subr.mxu0 0.0
    %643 = vmatpush1.xpose.msra.mxu0 0.0
    %644 = vmatprep.subr.mxu0 0.0
    %645 = vmatpush1.xpose.msra.mxu0 0.0
    %646 = vmatprep.subr.mxu0 0.0
    %647 = vmatpush1.xpose.msra.mxu0 0.0
    %648 = vmatprep.subr.mxu0 0.0
    %649 = vmatpush1.xpose.msra.mxu0 0.0
    %650 = vmatprep.subr.mxu0 0.0
    %651 = vmatpush1.xpose.msra.mxu0 0.0
    %652 = vmatprep.subr.mxu0 0.0
    %653 = vmatpush1.xpose.msra.mxu0 0.0
    %654 = vmatprep.subr.mxu0 0.0
    %655 = vmatpush1.xpose.msra.mxu0 0.0
    %656 = vmatprep.subr.mxu0 0.0
    %657 = vmatpush1.xpose.msra.mxu0 0.0
    %658 = vmatprep.subr.mxu0 0.0
    %659 = vmatpush1.xpose.msra.mxu0 0.0
    %660 = vmatprep.subr.mxu0 0.0
    %661 = vmatpush1.xpose.msra.mxu0 0.0
    %662 = vmatprep.subr.mxu0 %v545
    %663 = vmatpush1.xpose.msra.mxu0 %v544
    %664 = vmatprep.subr.mxu0 0.0
    %665 = vmatpush2.xpose.msra.mxu0 0.0
    %666 = vmatprep.subr.mxu0 0.0
    %667 = vmatpush2.xpose.msra.mxu0 0.0
    %668 = vmatprep.subr.mxu0 0.0
    %669 = vmatpush2.xpose.msra.mxu0 0.0
    %670 = vmatprep.subr.mxu0 0.0
    %671 = vmatpush2.xpose.msra.mxu0 0.0
    %672 = vmatprep.subr.mxu0 0.0
    %673 = vmatpush2.xpose.msra.mxu0 0.0
    %674 = vmatprep.subr.mxu0 0.0
    %675 = vmatpush2.xpose.msra.mxu0 0.0
    %676 = vmatprep.subr.mxu0 0.0
    %677 = vmatpush2.xpose.msra.mxu0 0.0
    %678 = vmatprep.subr.mxu0 0.0
    %679 = vmatpush2.xpose.msra.mxu0 0.0
    %680 = vmatprep.subr.mxu0 0.0
    %681 = vmatpush2.xpose.msra.mxu0 0.0
    %682 = vmatprep.subr.mxu0 0.0
    %683 = vmatpush2.xpose.msra.mxu0 0.0
    %684 = vmatprep.subr.mxu0 0.0
    %685 = vmatpush2.xpose.msra.mxu0 0.0
    %686 = vmatprep.subr.mxu0 0.0
    %687 = vmatpush2.xpose.msra.mxu0 0.0
    %688 = vmatprep.subr.mxu0 0.0
    %689 = vmatpush2.xpose.msra.mxu0 0.0
    %690 = vmatprep.subr.mxu0 0.0
    %691 = vmatpush2.xpose.msra.mxu0 0.0
    %692 = vmatprep.subr.mxu0 0.0
    %693 = vmatpush2.xpose.msra.mxu0 0.0
    %694 = vmatprep.subr.mxu0 0.0
    %695 = vmatpush2.xpose.msra.mxu0 0.0
    %696 = vmatprep.mubr.f32.mxu0 %v545
    %697 = vmatmul.mubr.f32.gmra.mxu0 %v544
    %v698 = vpop.f32.mrf.mxu0
    %v699 = vadd.f32 0.0, %v698
    %v700 = vpop.f32.mrf.mxu0
    %701 = vdwg.mxu0
    %702 = vmatprep.subr.mxu0 0.0
    %703 = vmatpush1.xpose.msra.mxu0 0.0
    %704 = vmatprep.subr.mxu0 0.0
    %705 = vmatpush1.xpose.msra.mxu0 0.0
    %706 = vmatprep.subr.mxu0 0.0
    %707 = vmatpush1.xpose.msra.mxu0 0.0
    %708 = vmatprep.subr.mxu0 0.0
    %709 = vmatpush1.xpose.msra.mxu0 0.0
    %710 = vmatprep.subr.mxu0 0.0
    %711 = vmatpush1.xpose.msra.mxu0 0.0
    %712 = vmatprep.subr.mxu0 0.0
    %713 = vmatpush1.xpose.msra.mxu0 0.0
    %714 = vmatprep.subr.mxu0 0.0
    %715 = vmatpush1.xpose.msra.mxu0 0.0
    %716 = vmatprep.subr.mxu0 0.0
    %717 = vmatpush1.xpose.msra.mxu0 0.0
    %718 = vmatprep.subr.mxu0 0.0
    %719 = vmatpush1.xpose.msra.mxu0 0.0
    %720 = vmatprep.subr.mxu0 0.0
    %721 = vmatpush1.xpose.msra.mxu0 0.0
    %722 = vmatprep.subr.mxu0 0.0
    %723 = vmatpush1.xpose.msra.mxu0 0.0
    %724 = vmatprep.subr.mxu0 0.0
    %725 = vmatpush1.xpose.msra.mxu0 0.0
    %726 = vmatprep.subr.mxu0 0.0
    %727 = vmatpush1.xpose.msra.mxu0 0.0
    %728 = vmatprep.subr.mxu0 0.0
    %729 = vmatpush1.xpose.msra.mxu0 0.0
    %730 = vmatprep.subr.mxu0 0.0
    %731 = vmatpush1.xpose.msra.mxu0 0.0
    %732 = vmatprep.subr.mxu0 %v547
    %733 = vmatpush1.xpose.msra.mxu0 %v546
    %734 = vmatprep.subr.mxu0 0.0
    %735 = vmatpush2.xpose.msra.mxu0 0.0
    %736 = vmatprep.subr.mxu0 0.0
    %737 = vmatpush2.xpose.msra.mxu0 0.0
    %738 = vmatprep.subr.mxu0 0.0
    %739 = vmatpush2.xpose.msra.mxu0 0.0
    %740 = vmatprep.subr.mxu0 0.0
    %741 = vmatpush2.xpose.msra.mxu0 0.0
    %742 = vmatprep.subr.mxu0 0.0
    %743 = vmatpush2.xpose.msra.mxu0 0.0
    %744 = vmatprep.subr.mxu0 0.0
    %745 = vmatpush2.xpose.msra.mxu0 0.0
    %746 = vmatprep.subr.mxu0 0.0
    %747 = vmatpush2.xpose.msra.mxu0 0.0
    %748 = vmatprep.subr.mxu0 0.0
    %749 = vmatpush2.xpose.msra.mxu0 0.0
    %750 = vmatprep.subr.mxu0 0.0
    %751 = vmatpush2.xpose.msra.mxu0 0.0
    %752 = vmatprep.subr.mxu0 0.0
    %753 = vmatpush2.xpose.msra.mxu0 0.0
    %754 = vmatprep.subr.mxu0 0.0
    %755 = vmatpush2.xpose.msra.mxu0 0.0
    %756 = vmatprep.subr.mxu0 0.0
    %757 = vmatpush2.xpose.msra.mxu0 0.0
    %758 = vmatprep.subr.mxu0 0.0
    %759 = vmatpush2.xpose.msra.mxu0 0.0
    %760 = vmatprep.subr.mxu0 0.0
    %761 = vmatpush2.xpose.msra.mxu0 0.0
    %762 = vmatprep.subr.mxu0 0.0
    %763 = vmatpush2.xpose.msra.mxu0 0.0
    %764 = vmatprep.subr.mxu0 0.0
    %765 = vmatpush2.xpose.msra.mxu0 0.0
    %766 = vmatprep.mubr.f32.mxu0 %v547
    %767 = vmatmul.mubr.f32.gmra.mxu0 %v546
    %v768 = vpop.f32.mrf.mxu0
    %v769 = vadd.f32 0.0, %v768
    %v770 = vpop.f32.mrf.mxu0
    %771 = vdwg.mxu0
    %v772 = vmul.f32 %v235, %v587
    %v773 = vmul.f32 %v236, %v627
    %v775 = vsel %vm391, %v699, 0
    %777 = vmatprep.subr.mxu0 0.0
    %778 = vmatpush1.msra.mxu0 0.0
    %779 = vmatprep.subr.mxu0 0.0
    %780 = vmatpush1.msra.mxu0 0.0
    %781 = vmatprep.subr.mxu0 0.0
    %782 = vmatpush1.msra.mxu0 0.0
    %783 = vmatprep.subr.mxu0 0.0
    %784 = vmatpush1.msra.mxu0 0.0
    %785 = vmatprep.subr.mxu0 0.0
    %786 = vmatpush1.msra.mxu0 0.0
    %787 = vmatprep.subr.mxu0 0.0
    %788 = vmatpush1.msra.mxu0 0.0
    %789 = vmatprep.subr.mxu0 0.0
    %790 = vmatpush1.msra.mxu0 0.0
    %791 = vmatprep.subr.mxu0 0.0
    %792 = vmatpush1.msra.mxu0 0.0
    %793 = vmatprep.subr.mxu0 0.0
    %794 = vmatpush1.msra.mxu0 0.0
    %795 = vmatprep.subr.mxu0 0.0
    %796 = vmatpush1.msra.mxu0 0.0
    %797 = vmatprep.subr.mxu0 0.0
    %798 = vmatpush1.msra.mxu0 0.0
    %799 = vmatprep.subr.mxu0 0.0
    %800 = vmatpush1.msra.mxu0 0.0
    %801 = vmatprep.subr.mxu0 0.0
    %802 = vmatpush1.msra.mxu0 0.0
    %803 = vmatprep.subr.mxu0 0.0
    %804 = vmatpush1.msra.mxu0 0.0
    %805 = vmatprep.subr.mxu0 0.0
    %806 = vmatpush1.msra.mxu0 0.0
    %807 = vmatprep.subr.mxu0 0.0
    %808 = vmatpush1.msra.mxu0 %v235
    %809 = vmatprep.subr.mxu0 0.0
    %810 = vmatpush2.msra.mxu0 0.0
    %811 = vmatprep.subr.mxu0 0.0
    %812 = vmatpush2.msra.mxu0 0.0
    %813 = vmatprep.subr.mxu0 0.0
    %814 = vmatpush2.msra.mxu0 0.0
    %815 = vmatprep.subr.mxu0 0.0
    %816 = vmatpush2.msra.mxu0 0.0
    %817 = vmatprep.subr.mxu0 0.0
    %818 = vmatpush2.msra.mxu0 0.0
    %819 = vmatprep.subr.mxu0 0.0
    %820 = vmatpush2.msra.mxu0 0.0
    %821 = vmatprep.subr.mxu0 0.0
    %822 = vmatpush2.msra.mxu0 0.0
    %823 = vmatprep.subr.mxu0 0.0
    %824 = vmatpush2.msra.mxu0 0.0
    %825 = vmatprep.subr.mxu0 0.0
    %826 = vmatpush2.msra.mxu0 0.0
    %827 = vmatprep.subr.mxu0 0.0
    %828 = vmatpush2.msra.mxu0 0.0
    %829 = vmatprep.subr.mxu0 0.0
    %830 = vmatpush2.msra.mxu0 0.0
    %831 = vmatprep.subr.mxu0 0.0
    %832 = vmatpush2.msra.mxu0 0.0
    %833 = vmatprep.subr.mxu0 0.0
    %834 = vmatpush2.msra.mxu0 0.0
    %835 = vmatprep.subr.mxu0 0.0
    %836 = vmatpush2.msra.mxu0 0.0
    %837 = vmatprep.subr.mxu0 0.0
    %838 = vmatpush2.msra.mxu0 0.0
    %839 = vmatprep.subr.mxu0 0.0
    %840 = vmatpush2.msra.mxu0 0.0
    %841 = vmatprep.mubr.f32.mxu0 0.0
    %842 = vmatmul.mubr.f32.gmra.mxu0 %v775
    %v843 = vpop.f32.mrf.mxu0
    %v844 = vadd.f32 1e-06, %v843
    %v845 = vpop.f32.mrf.mxu0
    %846 = vdwg.mxu0
    %v848 = vsel %vm391, %v769, 0
    %850 = vmatprep.subr.mxu0 0.0
    %851 = vmatpush1.msra.mxu0 0.0
    %852 = vmatprep.subr.mxu0 0.0
    %853 = vmatpush1.msra.mxu0 0.0
    %854 = vmatprep.subr.mxu0 0.0
    %855 = vmatpush1.msra.mxu0 0.0
    %856 = vmatprep.subr.mxu0 0.0
    %857 = vmatpush1.msra.mxu0 0.0
    %858 = vmatprep.subr.mxu0 0.0
    %859 = vmatpush1.msra.mxu0 0.0
    %860 = vmatprep.subr.mxu0 0.0
    %861 = vmatpush1.msra.mxu0 0.0
    %862 = vmatprep.subr.mxu0 0.0
    %863 = vmatpush1.msra.mxu0 0.0
    %864 = vmatprep.subr.mxu0 0.0
    %865 = vmatpush1.msra.mxu0 0.0
    %866 = vmatprep.subr.mxu0 0.0
    %867 = vmatpush1.msra.mxu0 0.0
    %868 = vmatprep.subr.mxu0 0.0
    %869 = vmatpush1.msra.mxu0 0.0
    %870 = vmatprep.subr.mxu0 0.0
    %871 = vmatpush1.msra.mxu0 0.0
    %872 = vmatprep.subr.mxu0 0.0
    %873 = vmatpush1.msra.mxu0 0.0
    %874 = vmatprep.subr.mxu0 0.0
    %875 = vmatpush1.msra.mxu0 0.0
    %876 = vmatprep.subr.mxu0 0.0
    %877 = vmatpush1.msra.mxu0 0.0
    %878 = vmatprep.subr.mxu0 0.0
    %879 = vmatpush1.msra.mxu0 0.0
    %880 = vmatprep.subr.mxu0 0.0
    %881 = vmatpush1.msra.mxu0 %v236
    %882 = vmatprep.subr.mxu0 0.0
    %883 = vmatpush2.msra.mxu0 0.0
    %884 = vmatprep.subr.mxu0 0.0
    %885 = vmatpush2.msra.mxu0 0.0
    %886 = vmatprep.subr.mxu0 0.0
    %887 = vmatpush2.msra.mxu0 0.0
    %888 = vmatprep.subr.mxu0 0.0
    %889 = vmatpush2.msra.mxu0 0.0
    %890 = vmatprep.subr.mxu0 0.0
    %891 = vmatpush2.msra.mxu0 0.0
    %892 = vmatprep.subr.mxu0 0.0
    %893 = vmatpush2.msra.mxu0 0.0
    %894 = vmatprep.subr.mxu0 0.0
    %895 = vmatpush2.msra.mxu0 0.0
    %896 = vmatprep.subr.mxu0 0.0
    %897 = vmatpush2.msra.mxu0 0.0
    %898 = vmatprep.subr.mxu0 0.0
    %899 = vmatpush2.msra.mxu0 0.0
    %900 = vmatprep.subr.mxu0 0.0
    %901 = vmatpush2.msra.mxu0 0.0
    %902 = vmatprep.subr.mxu0 0.0
    %903 = vmatpush2.msra.mxu0 0.0
    %904 = vmatprep.subr.mxu0 0.0
    %905 = vmatpush2.msra.mxu0 0.0
    %906 = vmatprep.subr.mxu0 0.0
    %907 = vmatpush2.msra.mxu0 0.0
    %908 = vmatprep.subr.mxu0 0.0
    %909 = vmatpush2.msra.mxu0 0.0
    %910 = vmatprep.subr.mxu0 0.0
    %911 = vmatpush2.msra.mxu0 0.0
    %912 = vmatprep.subr.mxu0 0.0
    %913 = vmatpush2.msra.mxu0 0.0
    %914 = vmatprep.mubr.f32.mxu0 0.0
    %915 = vmatmul.mubr.f32.gmra.mxu0 %v848
    %v916 = vpop.f32.mrf.mxu0
    %v917 = vadd.f32 1e-06, %v916
    %v918 = vpop.f32.mrf.mxu0
    %919 = vdwg.mxu0
    %v920 = vrcp.pop %v844
    %v921 = vrcp.pop %v917
    %v922 = vmul.f32 %v772, %v920
    %v923 = vmul.f32 %v773, %v921
    %v924 = vpack.c.bf16 %v922, %v922
    %v925 = vpack.c.bf16 %v923, %v923
    %v927 = vsel %vm44, %v924, 0
    %929 = vmatprep.subr.bf16.mxu0 0
    %930 = vmatpush1.bf16.msra.mxu0 0
    %931 = vmatprep.subr.bf16.mxu0 0
    %932 = vmatpush1.bf16.msra.mxu0 0
    %933 = vmatprep.subr.bf16.mxu0 0
    %934 = vmatpush1.bf16.msra.mxu0 0
    %935 = vmatprep.subr.bf16.mxu0 0
    %936 = vmatpush1.bf16.msra.mxu0 0
    %937 = vmatprep.subr.bf16.mxu0 0
    %938 = vmatpush1.bf16.msra.mxu0 0
    %939 = vmatprep.subr.bf16.mxu0 0
    %940 = vmatpush1.bf16.msra.mxu0 0
    %941 = vmatprep.subr.bf16.mxu0 %v39
    %942 = vmatpush1.bf16.msra.mxu0 %v38
    %943 = vmatprep.subr.bf16.mxu0 %v37
    %944 = vmatpush1.bf16.msra.mxu0 %v36
    %945 = vmatprep.subr.bf16.mxu0 0
    %946 = vmatpush2.bf16.msra.mxu0 0
    %947 = vmatprep.subr.bf16.mxu0 0
    %948 = vmatpush2.bf16.msra.mxu0 0
    %949 = vmatprep.subr.bf16.mxu0 0
    %950 = vmatpush2.bf16.msra.mxu0 0
    %951 = vmatprep.subr.bf16.mxu0 0
    %952 = vmatpush2.bf16.msra.mxu0 0
    %953 = vmatprep.subr.bf16.mxu0 0
    %954 = vmatpush2.bf16.msra.mxu0 0
    %955 = vmatprep.subr.bf16.mxu0 0
    %956 = vmatpush2.bf16.msra.mxu0 0
    %957 = vmatprep.subr.bf16.mxu0 0
    %958 = vmatpush2.bf16.msra.mxu0 0
    %959 = vmatprep.subr.bf16.mxu0 0
    %960 = vmatpush2.bf16.msra.mxu0 0
    %961 = vmatprep.mubr.bf16.mxu0 0
    %962 = vmatmul.mubr.bf16.gmra.mxu0 %v927
    %v963 = vpop.f32.mrf.mxu0
    %v964 = vadd.f32 0.0, %v963
    %v965 = vpop.f32.mrf.mxu0
    %v966 = vadd.f32 0.0, %v965
    %v967 = vpop.f32.mrf.mxu0
    %v968 = vpop.f32.mrf.mxu0
    %969 = vdwg.mxu0
    %v971 = vsel %vm44, %v925, 0
    %973 = vmatprep.subr.bf16.mxu0 0
    %974 = vmatpush1.bf16.msra.mxu0 0
    %975 = vmatprep.subr.bf16.mxu0 0
    %976 = vmatpush1.bf16.msra.mxu0 0
    %977 = vmatprep.subr.bf16.mxu0 0
    %978 = vmatpush1.bf16.msra.mxu0 0
    %979 = vmatprep.subr.bf16.mxu0 0
    %980 = vmatpush1.bf16.msra.mxu0 0
    %981 = vmatprep.subr.bf16.mxu0 0
    %982 = vmatpush1.bf16.msra.mxu0 0
    %983 = vmatprep.subr.bf16.mxu0 0
    %984 = vmatpush1.bf16.msra.mxu0 0
    %985 = vmatprep.subr.bf16.mxu0 %v104
    %986 = vmatpush1.bf16.msra.mxu0 %v103
    %987 = vmatprep.subr.bf16.mxu0 %v102
    %988 = vmatpush1.bf16.msra.mxu0 %v101
    %989 = vmatprep.subr.bf16.mxu0 0
    %990 = vmatpush2.bf16.msra.mxu0 0
    %991 = vmatprep.subr.bf16.mxu0 0
    %992 = vmatpush2.bf16.msra.mxu0 0
    %993 = vmatprep.subr.bf16.mxu0 0
    %994 = vmatpush2.bf16.msra.mxu0 0
    %995 = vmatprep.subr.bf16.mxu0 0
    %996 = vmatpush2.bf16.msra.mxu0 0
    %997 = vmatprep.subr.bf16.mxu0 0
    %998 = vmatpush2.bf16.msra.mxu0 0
    %999 = vmatprep.subr.bf16.mxu0 0
    %1000 = vmatpush2.bf16.msra.mxu0 0
    %1001 = vmatprep.subr.bf16.mxu0 0
    %1002 = vmatpush2.bf16.msra.mxu0 0
    %1003 = vmatprep.subr.bf16.mxu0 0
    %1004 = vmatpush2.bf16.msra.mxu0 0
    %1005 = vmatprep.mubr.bf16.mxu0 0
    %1006 = vmatmul.mubr.bf16.gmra.mxu0 %v971
    %v1007 = vpop.f32.mrf.mxu0
    %v1008 = vadd.f32 0.0, %v1007
    %v1009 = vpop.f32.mrf.mxu0
    %v1010 = vadd.f32 0.0, %v1009
    %v1011 = vpop.f32.mrf.mxu0
    %v1012 = vpop.f32.mrf.mxu0
    %1013 = vdwg.mxu0
  $region14: #{matrix_decomposition_2d.1} parent=0 // loop_footer
    %s230 = sadd.s32 1, %s226
  $region15: #{matrix_decomposition_2d.1} parent=0 // loop_footer_branch
    %225 = sbr.rel target = $region11
  $region16: #{matrix_decomposition_2d.1} parent=0 // loop_exit
    _
  %v1015 = vsel %vm44, %v235, 0
  %1017 = vmatprep.subr.mxu0 0.0
  %1018 = vmatpush1.xpose.msra.mxu0 0.0
  %1019 = vmatprep.subr.mxu0 0.0
  %1020 = vmatpush1.xpose.msra.mxu0 0.0
  %1021 = vmatprep.subr.mxu0 0.0
  %1022 = vmatpush1.xpose.msra.mxu0 0.0
  %1023 = vmatprep.subr.mxu0 0.0
  %1024 = vmatpush1.xpose.msra.mxu0 0.0
  %1025 = vmatprep.subr.mxu0 0.0
  %1026 = vmatpush1.xpose.msra.mxu0 0.0
  %1027 = vmatprep.subr.mxu0 0.0
  %1028 = vmatpush1.xpose.msra.mxu0 0.0
  %1029 = vmatprep.subr.mxu0 0.0
  %1030 = vmatpush1.xpose.msra.mxu0 0.0
  %1031 = vmatprep.subr.mxu0 0.0
  %1032 = vmatpush1.xpose.msra.mxu0 0.0
  %1033 = vmatprep.subr.mxu0 0.0
  %1034 = vmatpush1.xpose.msra.mxu0 0.0
  %1035 = vmatprep.subr.mxu0 0.0
  %1036 = vmatpush1.xpose.msra.mxu0 0.0
  %1037 = vmatprep.subr.mxu0 0.0
  %1038 = vmatpush1.xpose.msra.mxu0 0.0
  %1039 = vmatprep.subr.mxu0 0.0
  %1040 = vmatpush1.xpose.msra.mxu0 0.0
  %1041 = vmatprep.subr.mxu0 0.0
  %1042 = vmatpush1.xpose.msra.mxu0 0.0
  %1043 = vmatprep.subr.mxu0 0.0
  %1044 = vmatpush1.xpose.msra.mxu0 0.0
  %1045 = vmatprep.subr.mxu0 0.0
  %1046 = vmatpush1.xpose.msra.mxu0 0.0
  %1047 = vmatprep.subr.mxu0 0.0
  %1048 = vmatpush1.xpose.msra.mxu0 %v1015
  %1049 = vmatprep.subr.mxu0 0.0
  %1050 = vmatpush2.xpose.msra.mxu0 0.0
  %1051 = vmatprep.subr.mxu0 0.0
  %1052 = vmatpush2.xpose.msra.mxu0 0.0
  %1053 = vmatprep.subr.mxu0 0.0
  %1054 = vmatpush2.xpose.msra.mxu0 0.0
  %1055 = vmatprep.subr.mxu0 0.0
  %1056 = vmatpush2.xpose.msra.mxu0 0.0
  %1057 = vmatprep.subr.mxu0 0.0
  %1058 = vmatpush2.xpose.msra.mxu0 0.0
  %1059 = vmatprep.subr.mxu0 0.0
  %1060 = vmatpush2.xpose.msra.mxu0 0.0
  %1061 = vmatprep.subr.mxu0 0.0
  %1062 = vmatpush2.xpose.msra.mxu0 0.0
  %1063 = vmatprep.subr.mxu0 0.0
  %1064 = vmatpush2.xpose.msra.mxu0 0.0
  %1065 = vmatprep.subr.mxu0 0.0
  %1066 = vmatpush2.xpose.msra.mxu0 0.0
  %1067 = vmatprep.subr.mxu0 0.0
  %1068 = vmatpush2.xpose.msra.mxu0 0.0
  %1069 = vmatprep.subr.mxu0 0.0
  %1070 = vmatpush2.xpose.msra.mxu0 0.0
  %1071 = vmatprep.subr.mxu0 0.0
  %1072 = vmatpush2.xpose.msra.mxu0 0.0
  %1073 = vmatprep.subr.mxu0 0.0
  %1074 = vmatpush2.xpose.msra.mxu0 0.0
  %1075 = vmatprep.subr.mxu0 0.0
  %1076 = vmatpush2.xpose.msra.mxu0 0.0
  %1077 = vmatprep.subr.mxu0 0.0
  %1078 = vmatpush2.xpose.msra.mxu0 0.0
  %1079 = vmatprep.subr.mxu0 0.0
  %1080 = vmatpush2.xpose.msra.mxu0 0.0
  %1081 = vmatprep.mubr.f32.mxu0 0.0
  %1082 = vmatmul.mubr.f32.gmra.mxu0 %v1015
  %v1083 = vpop.f32.mrf.mxu0
  %v1084 = vadd.f32 0.0, %v1083
  %v1085 = vpop.f32.mrf.mxu0
  %1086 = vdwg.mxu0
  %v1088 = vsel %vm44, %v236, 0
  %1090 = vmatprep.subr.mxu0 0.0
  %1091 = vmatpush1.xpose.msra.mxu0 0.0
  %1092 = vmatprep.subr.mxu0 0.0
  %1093 = vmatpush1.xpose.msra.mxu0 0.0
  %1094 = vmatprep.subr.mxu0 0.0
  %1095 = vmatpush1.xpose.msra.mxu0 0.0
  %1096 = vmatprep.subr.mxu0 0.0
  %1097 = vmatpush1.xpose.msra.mxu0 0.0
  %1098 = vmatprep.subr.mxu0 0.0
  %1099 = vmatpush1.xpose.msra.mxu0 0.0
  %1100 = vmatprep.subr.mxu0 0.0
  %1101 = vmatpush1.xpose.msra.mxu0 0.0
  %1102 = vmatprep.subr.mxu0 0.0
  %1103 = vmatpush1.xpose.msra.mxu0 0.0
  %1104 = vmatprep.subr.mxu0 0.0
  %1105 = vmatpush1.xpose.msra.mxu0 0.0
  %1106 = vmatprep.subr.mxu0 0.0
  %1107 = vmatpush1.xpose.msra.mxu0 0.0
  %1108 = vmatprep.subr.mxu0 0.0
  %1109 = vmatpush1.xpose.msra.mxu0 0.0
  %1110 = vmatprep.subr.mxu0 0.0
  %1111 = vmatpush1.xpose.msra.mxu0 0.0
  %1112 = vmatprep.subr.mxu0 0.0
  %1113 = vmatpush1.xpose.msra.mxu0 0.0
  %1114 = vmatprep.subr.mxu0 0.0
  %1115 = vmatpush1.xpose.msra.mxu0 0.0
  %1116 = vmatprep.subr.mxu0 0.0
  %1117 = vmatpush1.xpose.msra.mxu0 0.0
  %1118 = vmatprep.subr.mxu0 0.0
  %1119 = vmatpush1.xpose.msra.mxu0 0.0
  %1120 = vmatprep.subr.mxu0 0.0
  %1121 = vmatpush1.xpose.msra.mxu0 %v1088
  %1122 = vmatprep.subr.mxu0 0.0
  %1123 = vmatpush2.xpose.msra.mxu0 0.0
  %1124 = vmatprep.subr.mxu0 0.0
  %1125 = vmatpush2.xpose.msra.mxu0 0.0
  %1126 = vmatprep.subr.mxu0 0.0
  %1127 = vmatpush2.xpose.msra.mxu0 0.0
  %1128 = vmatprep.subr.mxu0 0.0
  %1129 = vmatpush2.xpose.msra.mxu0 0.0
  %1130 = vmatprep.subr.mxu0 0.0
  %1131 = vmatpush2.xpose.msra.mxu0 0.0
  %1132 = vmatprep.subr.mxu0 0.0
  %1133 = vmatpush2.xpose.msra.mxu0 0.0
  %1134 = vmatprep.subr.mxu0 0.0
  %1135 = vmatpush2.xpose.msra.mxu0 0.0
  %1136 = vmatprep.subr.mxu0 0.0
  %1137 = vmatpush2.xpose.msra.mxu0 0.0
  %1138 = vmatprep.subr.mxu0 0.0
  %1139 = vmatpush2.xpose.msra.mxu0 0.0
  %1140 = vmatprep.subr.mxu0 0.0
  %1141 = vmatpush2.xpose.msra.mxu0 0.0
  %1142 = vmatprep.subr.mxu0 0.0
  %1143 = vmatpush2.xpose.msra.mxu0 0.0
  %1144 = vmatprep.subr.mxu0 0.0
  %1145 = vmatpush2.xpose.msra.mxu0 0.0
  %1146 = vmatprep.subr.mxu0 0.0
  %1147 = vmatpush2.xpose.msra.mxu0 0.0
  %1148 = vmatprep.subr.mxu0 0.0
  %1149 = vmatpush2.xpose.msra.mxu0 0.0
  %1150 = vmatprep.subr.mxu0 0.0
  %1151 = vmatpush2.xpose.msra.mxu0 0.0
  %1152 = vmatprep.subr.mxu0 0.0
  %1153 = vmatpush2.xpose.msra.mxu0 0.0
  %1154 = vmatprep.mubr.f32.mxu0 0.0
  %1155 = vmatmul.mubr.f32.gmra.mxu0 %v1088
  %v1156 = vpop.f32.mrf.mxu0
  %v1157 = vadd.f32 0.0, %v1156
  %v1158 = vpop.f32.mrf.mxu0
  %1159 = vdwg.mxu0
  %v1160 = vmul.f32 %v231, %v237
  %v1161 = vmul.f32 %v232, %v238
  %v1162 = vmul.f32 %v233, %v239
  %v1163 = vmul.f32 %v234, %v240
  %vm1164 = vcmask 64512
  %v1166 = vsel %vm1164, %v1084, 0
  %1168 = vmatprep.subr.mxu0 0.0
  %1169 = vmatpush1.msra.mxu0 0.0
  %1170 = vmatprep.subr.mxu0 0.0
  %1171 = vmatpush1.msra.mxu0 0.0
  %1172 = vmatprep.subr.mxu0 0.0
  %1173 = vmatpush1.msra.mxu0 0.0
  %1174 = vmatprep.subr.mxu0 0.0
  %1175 = vmatpush1.msra.mxu0 0.0
  %1176 = vmatprep.subr.mxu0 0.0
  %1177 = vmatpush1.msra.mxu0 0.0
  %1178 = vmatprep.subr.mxu0 0.0
  %1179 = vmatpush1.msra.mxu0 0.0
  %1180 = vmatprep.subr.mxu0 0.0
  %1181 = vmatpush1.msra.mxu0 0.0
  %1182 = vmatprep.subr.mxu0 0.0
  %1183 = vmatpush1.msra.mxu0 0.0
  %1184 = vmatprep.subr.mxu0 0.0
  %1185 = vmatpush1.msra.mxu0 0.0
  %1186 = vmatprep.subr.mxu0 0.0
  %1187 = vmatpush1.msra.mxu0 0.0
  %1188 = vmatprep.subr.mxu0 0.0
  %1189 = vmatpush1.msra.mxu0 0.0
  %1190 = vmatprep.subr.mxu0 0.0
  %1191 = vmatpush1.msra.mxu0 0.0
  %1192 = vmatprep.subr.mxu0 0.0
  %1193 = vmatpush1.msra.mxu0 0.0
  %1194 = vmatprep.subr.mxu0 0.0
  %1195 = vmatpush1.msra.mxu0 0.0
  %1196 = vmatprep.subr.mxu0 0.0
  %1197 = vmatpush1.msra.mxu0 0.0
  %1198 = vmatprep.subr.mxu0 %v232
  %1199 = vmatpush1.msra.mxu0 %v231
  %1200 = vmatprep.subr.mxu0 0.0
  %1201 = vmatpush2.msra.mxu0 0.0
  %1202 = vmatprep.subr.mxu0 0.0
  %1203 = vmatpush2.msra.mxu0 0.0
  %1204 = vmatprep.subr.mxu0 0.0
  %1205 = vmatpush2.msra.mxu0 0.0
  %1206 = vmatprep.subr.mxu0 0.0
  %1207 = vmatpush2.msra.mxu0 0.0
  %1208 = vmatprep.subr.mxu0 0.0
  %1209 = vmatpush2.msra.mxu0 0.0
  %1210 = vmatprep.subr.mxu0 0.0
  %1211 = vmatpush2.msra.mxu0 0.0
  %1212 = vmatprep.subr.mxu0 0.0
  %1213 = vmatpush2.msra.mxu0 0.0
  %1214 = vmatprep.subr.mxu0 0.0
  %1215 = vmatpush2.msra.mxu0 0.0
  %1216 = vmatprep.subr.mxu0 0.0
  %1217 = vmatpush2.msra.mxu0 0.0
  %1218 = vmatprep.subr.mxu0 0.0
  %1219 = vmatpush2.msra.mxu0 0.0
  %1220 = vmatprep.subr.mxu0 0.0
  %1221 = vmatpush2.msra.mxu0 0.0
  %1222 = vmatprep.subr.mxu0 0.0
  %1223 = vmatpush2.msra.mxu0 0.0
  %1224 = vmatprep.subr.mxu0 0.0
  %1225 = vmatpush2.msra.mxu0 0.0
  %1226 = vmatprep.subr.mxu0 0.0
  %1227 = vmatpush2.msra.mxu0 0.0
  %1228 = vmatprep.subr.mxu0 0.0
  %1229 = vmatpush2.msra.mxu0 0.0
  %1230 = vmatprep.subr.mxu0 0.0
  %1231 = vmatpush2.msra.mxu0 0.0
  %1232 = vmatprep.mubr.f32.mxu0 0.0
  %1233 = vmatmul.mubr.f32.gmra.mxu0 %v1166
  %v1234 = vpop.f32.mrf.mxu0
  %v1235 = vadd.f32 1e-06, %v1234
  %v1236 = vpop.f32.mrf.mxu0
  %v1237 = vadd.f32 1e-06, %v1236
  %1238 = vdwg.mxu0
  %v1240 = vsel %vm1164, %v1157, 0
  %1242 = vmatprep.subr.mxu0 0.0
  %1243 = vmatpush1.msra.mxu0 0.0
  %1244 = vmatprep.subr.mxu0 0.0
  %1245 = vmatpush1.msra.mxu0 0.0
  %1246 = vmatprep.subr.mxu0 0.0
  %1247 = vmatpush1.msra.mxu0 0.0
  %1248 = vmatprep.subr.mxu0 0.0
  %1249 = vmatpush1.msra.mxu0 0.0
  %1250 = vmatprep.subr.mxu0 0.0
  %1251 = vmatpush1.msra.mxu0 0.0
  %1252 = vmatprep.subr.mxu0 0.0
  %1253 = vmatpush1.msra.mxu0 0.0
  %1254 = vmatprep.subr.mxu0 0.0
  %1255 = vmatpush1.msra.mxu0 0.0
  %1256 = vmatprep.subr.mxu0 0.0
  %1257 = vmatpush1.msra.mxu0 0.0
  %1258 = vmatprep.subr.mxu0 0.0
  %1259 = vmatpush1.msra.mxu0 0.0
  %1260 = vmatprep.subr.mxu0 0.0
  %1261 = vmatpush1.msra.mxu0 0.0
  %1262 = vmatprep.subr.mxu0 0.0
  %1263 = vmatpush1.msra.mxu0 0.0
  %1264 = vmatprep.subr.mxu0 0.0
  %1265 = vmatpush1.msra.mxu0 0.0
  %1266 = vmatprep.subr.mxu0 0.0
  %1267 = vmatpush1.msra.mxu0 0.0
  %1268 = vmatprep.subr.mxu0 0.0
  %1269 = vmatpush1.msra.mxu0 0.0
  %1270 = vmatprep.subr.mxu0 0.0
  %1271 = vmatpush1.msra.mxu0 0.0
  %1272 = vmatprep.subr.mxu0 %v234
  %1273 = vmatpush1.msra.mxu0 %v233
  %1274 = vmatprep.subr.mxu0 0.0
  %1275 = vmatpush2.msra.mxu0 0.0
  %1276 = vmatprep.subr.mxu0 0.0
  %1277 = vmatpush2.msra.mxu0 0.0
  %1278 = vmatprep.subr.mxu0 0.0
  %1279 = vmatpush2.msra.mxu0 0.0
  %1280 = vmatprep.subr.mxu0 0.0
  %1281 = vmatpush2.msra.mxu0 0.0
  %1282 = vmatprep.subr.mxu0 0.0
  %1283 = vmatpush2.msra.mxu0 0.0
  %1284 = vmatprep.subr.mxu0 0.0
  %1285 = vmatpush2.msra.mxu0 0.0
  %1286 = vmatprep.subr.mxu0 0.0
  %1287 = vmatpush2.msra.mxu0 0.0
  %1288 = vmatprep.subr.mxu0 0.0
  %1289 = vmatpush2.msra.mxu0 0.0
  %1290 = vmatprep.subr.mxu0 0.0
  %1291 = vmatpush2.msra.mxu0 0.0
  %1292 = vmatprep.subr.mxu0 0.0
  %1293 = vmatpush2.msra.mxu0 0.0
  %1294 = vmatprep.subr.mxu0 0.0
  %1295 = vmatpush2.msra.mxu0 0.0
  %1296 = vmatprep.subr.mxu0 0.0
  %1297 = vmatpush2.msra.mxu0 0.0
  %1298 = vmatprep.subr.mxu0 0.0
  %1299 = vmatpush2.msra.mxu0 0.0
  %1300 = vmatprep.subr.mxu0 0.0
  %1301 = vmatpush2.msra.mxu0 0.0
  %1302 = vmatprep.subr.mxu0 0.0
  %1303 = vmatpush2.msra.mxu0 0.0
  %1304 = vmatprep.subr.mxu0 0.0
  %1305 = vmatpush2.msra.mxu0 0.0
  %1306 = vmatprep.mubr.f32.mxu0 0.0
  %1307 = vmatmul.mubr.f32.gmra.mxu0 %v1240
  %v1308 = vpop.f32.mrf.mxu0
  %v1309 = vadd.f32 1e-06, %v1308
  %v1310 = vpop.f32.mrf.mxu0
  %v1311 = vadd.f32 1e-06, %v1310
  %1312 = vdwg.mxu0
  %v1313 = vrcp.pop %v1235
  %v1314 = vmul.f32 %v1160, %v1313
  %v1315 = vrcp.pop %v1237
  %v1316 = vmul.f32 %v1161, %v1315
  %v1317 = vrcp.pop %v1309
  %v1318 = vmul.f32 %v1162, %v1317
  %v1319 = vrcp.pop %v1311
  %v1320 = vmul.f32 %v1163, %v1319
  %1321 = vxpose.xlu0.b32.start [1/16] %v235, 128
  %1322 = vxpose.xlu0.b32.cont [2/16] 0.0, 128
  %1323 = vxpose.xlu0.b32.cont [3/16] 0.0, 128
  %1324 = vxpose.xlu0.b32.cont [4/16] 0.0, 128
  %1325 = vxpose.xlu0.b32.cont [5/16] 0.0, 128
  %1326 = vxpose.xlu0.b32.cont [6/16] 0.0, 128
  %1327 = vxpose.xlu0.b32.cont [7/16] 0.0, 128
  %1328 = vxpose.xlu0.b32.cont [8/16] 0.0, 128
  %1329 = vxpose.xlu0.b32.cont [9/16] 0.0, 128
  %1330 = vxpose.xlu0.b32.cont [10/16] 0.0, 128
  %1331 = vxpose.xlu0.b32.cont [11/16] 0.0, 128
  %1332 = vxpose.xlu0.b32.cont [12/16] 0.0, 128
  %1333 = vxpose.xlu0.b32.cont [13/16] 0.0, 128
  %1334 = vxpose.xlu0.b32.cont [14/16] 0.0, 128
  %1335 = vxpose.xlu0.b32.cont [15/16] 0.0, 128
  %1336 = vxpose.xlu0.b32.end [16/16] 0.0, 128
  %v1337 = vpop.trf.xlu0
  %v1338 = vpop.trf.xlu0
  %v1339 = vpop.trf.xlu0
  %v1340 = vpop.trf.xlu0
  %v1341 = vpop.trf.xlu0
  %v1342 = vpop.trf.xlu0
  %v1343 = vpop.trf.xlu0
  %v1344 = vpop.trf.xlu0
  %v1345 = vpop.trf.xlu0
  %v1346 = vpop.trf.xlu0
  %v1347 = vpop.trf.xlu0
  %v1348 = vpop.trf.xlu0
  %v1349 = vpop.trf.xlu0
  %v1350 = vpop.trf.xlu0
  %v1351 = vpop.trf.xlu0
  %v1352 = vpop.trf.xlu0
  %1353 = vxpose.xlu0.b32.start [1/16] %v236, 128
  %1354 = vxpose.xlu0.b32.cont [2/16] 0.0, 128
  %1355 = vxpose.xlu0.b32.cont [3/16] 0.0, 128
  %1356 = vxpose.xlu0.b32.cont [4/16] 0.0, 128
  %1357 = vxpose.xlu0.b32.cont [5/16] 0.0, 128
  %1358 = vxpose.xlu0.b32.cont [6/16] 0.0, 128
  %1359 = vxpose.xlu0.b32.cont [7/16] 0.0, 128
  %1360 = vxpose.xlu0.b32.cont [8/16] 0.0, 128
  %1361 = vxpose.xlu0.b32.cont [9/16] 0.0, 128
  %1362 = vxpose.xlu0.b32.cont [10/16] 0.0, 128
  %1363 = vxpose.xlu0.b32.cont [11/16] 0.0, 128
  %1364 = vxpose.xlu0.b32.cont [12/16] 0.0, 128
  %1365 = vxpose.xlu0.b32.cont [13/16] 0.0, 128
  %1366 = vxpose.xlu0.b32.cont [14/16] 0.0, 128
  %1367 = vxpose.xlu0.b32.cont [15/16] 0.0, 128
  %1368 = vxpose.xlu0.b32.end [16/16] 0.0, 128
  %v1369 = vpop.trf.xlu0
  %v1370 = vpop.trf.xlu0
  %v1371 = vpop.trf.xlu0
  %v1372 = vpop.trf.xlu0
  %v1373 = vpop.trf.xlu0
  %v1374 = vpop.trf.xlu0
  %v1375 = vpop.trf.xlu0
  %v1376 = vpop.trf.xlu0
  %v1377 = vpop.trf.xlu0
  %v1378 = vpop.trf.xlu0
  %v1379 = vpop.trf.xlu0
  %v1380 = vpop.trf.xlu0
  %v1381 = vpop.trf.xlu0
  %v1382 = vpop.trf.xlu0
  %v1383 = vpop.trf.xlu0
  %v1384 = vpop.trf.xlu0
  %v1385 = vpack.c.bf16 %v1338, %v1337
  %v1386 = vpack.c.bf16 %v1340, %v1339
  %v1387 = vpack.c.bf16 %v1370, %v1369
  %v1388 = vpack.c.bf16 %v1372, %v1371
  %v1389 = vpack.c.bf16 %v1314, %v1314
  %v1390 = vpack.c.bf16 %v1316, %v1316
  %v1391 = vpack.c.bf16 %v1318, %v1318
  %v1392 = vpack.c.bf16 %v1320, %v1320
  %v1394 = vsel %vm1164, %v1385, 0
  %v1397 = vsel %vm1164, %v1386, 0
  %vm1399 = vcmask 1043456
  %v1401 = vsel %vm1399, %v1389, 0
  %v1404 = vsel %vm1399, %v1390, 0
  %1406 = vmatprep.subr.bf16.mxu0 0
  %1407 = vmatpush1.bf16.msra.mxu0 0
  %1408 = vmatprep.subr.bf16.mxu0 0
  %1409 = vmatpush1.bf16.msra.mxu0 0
  %1410 = vmatprep.subr.bf16.mxu0 0
  %1411 = vmatpush1.bf16.msra.mxu0 0
  %1412 = vmatprep.subr.bf16.mxu0 0
  %1413 = vmatpush1.bf16.msra.mxu0 0
  %1414 = vmatprep.subr.bf16.mxu0 0
  %1415 = vmatpush1.bf16.msra.mxu0 0
  %1416 = vmatprep.subr.bf16.mxu0 0
  %1417 = vmatpush1.bf16.msra.mxu0 0
  %1418 = vmatprep.subr.bf16.mxu0 0
  %1419 = vmatpush1.bf16.msra.mxu0 0
  %1420 = vmatprep.subr.bf16.mxu0 %v1404
  %1421 = vmatpush1.bf16.msra.mxu0 %v1401
  %1422 = vmatprep.subr.bf16.mxu0 0
  %1423 = vmatpush2.bf16.msra.mxu0 0
  %1424 = vmatprep.subr.bf16.mxu0 0
  %1425 = vmatpush2.bf16.msra.mxu0 0
  %1426 = vmatprep.subr.bf16.mxu0 0
  %1427 = vmatpush2.bf16.msra.mxu0 0
  %1428 = vmatprep.subr.bf16.mxu0 0
  %1429 = vmatpush2.bf16.msra.mxu0 0
  %1430 = vmatprep.subr.bf16.mxu0 0
  %1431 = vmatpush2.bf16.msra.mxu0 0
  %1432 = vmatprep.subr.bf16.mxu0 0
  %1433 = vmatpush2.bf16.msra.mxu0 0
  %1434 = vmatprep.subr.bf16.mxu0 0
  %1435 = vmatpush2.bf16.msra.mxu0 0
  %1436 = vmatprep.subr.bf16.mxu0 0
  %1437 = vmatpush2.bf16.msra.mxu0 0
  %1438 = vmatprep.mubr.bf16.mxu0 0
  %1439 = vmatmul.mubr.bf16.gmra.mxu0 %v1394
  %v1440 = vpop.f32.mrf.mxu0
  %v1441 = vadd.f32 0.0, %v1440
  %v1442 = vpop.f32.mrf.mxu0
  %v1443 = vadd.f32 0.0, %v1442
  %v1444 = vpop.f32.mrf.mxu0
  %v1445 = vadd.f32 0.0, %v1444
  %v1446 = vpop.f32.mrf.mxu0
  %v1447 = vadd.f32 0.0, %v1446
  %1448 = vmatprep.mubr.bf16.mxu0 0
  %1449 = vmatmul.mubr.bf16.gmra.mxu0 %v1397
  %v1450 = vpop.f32.mrf.mxu0
  %v1451 = vadd.f32 0.0, %v1450
  %v1452 = vpop.f32.mrf.mxu0
  %v1453 = vadd.f32 0.0, %v1452
  %v1454 = vpop.f32.mrf.mxu0
  %v1455 = vadd.f32 0.0, %v1454
  %v1456 = vpop.f32.mrf.mxu0
  %v1457 = vadd.f32 0.0, %v1456
  %1458 = vdwg.mxu0
  %v1460 = vsel %vm1164, %v1387, 0
  %v1463 = vsel %vm1164, %v1388, 0
  %v1466 = vsel %vm1399, %v1391, 0
  %v1469 = vsel %vm1399, %v1392, 0
  %1471 = vmatprep.subr.bf16.mxu0 0
  %1472 = vmatpush1.bf16.msra.mxu0 0
  %1473 = vmatprep.subr.bf16.mxu0 0
  %1474 = vmatpush1.bf16.msra.mxu0 0
  %1475 = vmatprep.subr.bf16.mxu0 0
  %1476 = vmatpush1.bf16.msra.mxu0 0
  %1477 = vmatprep.subr.bf16.mxu0 0
  %1478 = vmatpush1.bf16.msra.mxu0 0
  %1479 = vmatprep.subr.bf16.mxu0 0
  %1480 = vmatpush1.bf16.msra.mxu0 0
  %1481 = vmatprep.subr.bf16.mxu0 0
  %1482 = vmatpush1.bf16.msra.mxu0 0
  %1483 = vmatprep.subr.bf16.mxu0 0
  %1484 = vmatpush1.bf16.msra.mxu0 0
  %1485 = vmatprep.subr.bf16.mxu0 %v1469
  %1486 = vmatpush1.bf16.msra.mxu0 %v1466
  %1487 = vmatprep.subr.bf16.mxu0 0
  %1488 = vmatpush2.bf16.msra.mxu0 0
  %1489 = vmatprep.subr.bf16.mxu0 0
  %1490 = vmatpush2.bf16.msra.mxu0 0
  %1491 = vmatprep.subr.bf16.mxu0 0
  %1492 = vmatpush2.bf16.msra.mxu0 0
  %1493 = vmatprep.subr.bf16.mxu0 0
  %1494 = vmatpush2.bf16.msra.mxu0 0
  %1495 = vmatprep.subr.bf16.mxu0 0
  %1496 = vmatpush2.bf16.msra.mxu0 0
  %1497 = vmatprep.subr.bf16.mxu0 0
  %1498 = vmatpush2.bf16.msra.mxu0 0
  %1499 = vmatprep.subr.bf16.mxu0 0
  %1500 = vmatpush2.bf16.msra.mxu0 0
  %1501 = vmatprep.subr.bf16.mxu0 0
  %1502 = vmatpush2.bf16.msra.mxu0 0
  %1503 = vmatprep.mubr.bf16.mxu0 0
  %1504 = vmatmul.mubr.bf16.gmra.mxu0 %v1460
  %v1505 = vpop.f32.mrf.mxu0
  %v1506 = vadd.f32 0.0, %v1505
  %v1507 = vpop.f32.mrf.mxu0
  %v1508 = vadd.f32 0.0, %v1507
  %v1509 = vpop.f32.mrf.mxu0
  %v1510 = vadd.f32 0.0, %v1509
  %v1511 = vpop.f32.mrf.mxu0
  %v1512 = vadd.f32 0.0, %v1511
  %1513 = vmatprep.mubr.bf16.mxu0 0
  %1514 = vmatmul.mubr.bf16.gmra.mxu0 %v1463
  %v1515 = vpop.f32.mrf.mxu0
  %v1516 = vadd.f32 0.0, %v1515
  %v1517 = vpop.f32.mrf.mxu0
  %v1518 = vadd.f32 0.0, %v1517
  %v1519 = vpop.f32.mrf.mxu0
  %v1520 = vadd.f32 0.0, %v1519
  %v1521 = vpop.f32.mrf.mxu0
  %v1522 = vadd.f32 0.0, %v1521
  %1523 = vdwg.mxu0
  %1524 = vst [vmem:[%s2] sm:$0xff] %v1441
  %1525 = vst [vmem:[%s2 + $0x8] sm:$0xff] %v1443
  %1526 = vst [vmem:[%s2 + $0x10] sm:$0xff] %v1445
  %1527 = vst [vmem:[%s2 + $0x18] sm:$0xff] %v1447
  %1528 = vst [vmem:[%s2 + $0x20] sm:$0xff] %v1451
  %1529 = vst [vmem:[%s2 + $0x28] sm:$0xff] %v1453
  %1530 = vst [vmem:[%s2 + $0x30] sm:$0xff] %v1455
  %1531 = vst [vmem:[%s2 + $0x38] sm:$0xff] %v1457
  %1532 = vst [vmem:[%s2 + $0x40] sm:$0xff] %v1506
  %1533 = vst [vmem:[%s2 + $0x48] sm:$0xff] %v1508
  %1534 = vst [vmem:[%s2 + $0x50] sm:$0xff] %v1510
  %1535 = vst [vmem:[%s2 + $0x58] sm:$0xff] %v1512
  %1536 = vst [vmem:[%s2 + $0x60] sm:$0xff] %v1516
  %1537 = vst [vmem:[%s2 + $0x68] sm:$0xff] %v1518
  %1538 = vst [vmem:[%s2 + $0x70] sm:$0xff] %v1520
  %1539 = vst [vmem:[%s2 + $0x78] sm:$0xff] %v1522
  // Predicated region
  $region17: #{matrix_decomposition_2d.1} parent=0 // pred_check
    _
  $region18: #{matrix_decomposition_2d.1} parent=0 // pred_check_branch
    %1541 = sbr.rel (0) target = $region20
  $region19: #{matrix_decomposition_2d.1} parent=0 // pred_region
    _
  $region20: #{matrix_decomposition_2d.1} parent=0 // pred_fallthru
    _
  // Predicated region
  $region21: #{matrix_decomposition_2d.1} parent=0 // pred_check
    _
  $region22: #{matrix_decomposition_2d.1} parent=0 // pred_check_branch
    %1543 = sbr.rel (0) target = $region24
  $region23: #{matrix_decomposition_2d.1} parent=0 // pred_region
    _
  $region24: #{matrix_decomposition_2d.1} parent=0 // pred_fallthru
    _

</llo_original>
